<compile_context>
chip_gen: v7x
topology: tpu7x:2x2x1
jax: 0.10.0
libtpu: 0.0.40
codegen_flags: <defaults>
</compile_context>

<pallas_src>
import functools

import jax
import jax.numpy as jnp
from jax.experimental import pallas as pl
from jax.experimental.pallas import tpu as pltpu


def _block_maker_kernel(x_ref, r_ref, o_ref, *, block_size):
    # x_ref: (1, hr, s*w)    reshaped rows:  x_ref[0, yi, ki*w + c] == x[b, yi*s + ki, c]
    # r_ref: (w, w)          0/1 column-permutation matrix (resident; constant index_map)
    # o_ref: (1, s*s, hr, ws)  exact Unfold-layout output tile
    s = block_size
    _, hr, sw = x_ref.shape
    w = sw // s
    ws = w // s

    xt = x_ref[0]            # (hr, s*w)  one wide load of the whole tile
    r = r_ref[...]           # (w, w)

    for ki in range(s):                          # small static unroll (s iterations)
        # Row pick for kernel-row ki: contiguous lane slice (zero FLOPs, no strided indexing).
        rows = xt[:, ki * w:(ki + 1) * w]        # (hr, w) == x[b, yi*s + ki, :]
        # Column pick for ALL kj at once: one full-width MXU matmul against the 0/1 matrix R.
        #   y[:, kj*ws + xi] == rows[:, xi*s + kj]
        y = jnp.dot(rows, r,
                    precision=jax.lax.Precision.HIGHEST,
                    preferred_element_type=jnp.float32)
        y = y.astype(o_ref.dtype)
        for kj in range(s):
            o_ref[0, ki * s + kj, :, :] = y[:, kj * ws:(kj + 1) * ws]


def _pick_row_tile(hs, sub_mult, row_bytes, target_block_bytes):
    """Largest multiple of `sub_mult` that divides hs and keeps hr*row_bytes <= target.
    Falls back to the full hs (block dims equal to the array dims are always legal)."""
    max_rows = max(sub_mult, target_block_bytes // max(row_bytes, 1))
    if hs <= max_rows:
        return hs
    best = None
    cand = sub_mult
    while cand <= max_rows:
        if hs % cand == 0:
            best = cand
        cand += sub_mult
    # TODO(synk): for heights with no sub_mult-aligned divisor, switch to a cdiv grid with
    # masked edge blocks instead of falling back to the full height.
    return best if best is not None else hs


def block_maker(x, block_size=4, *, target_block_bytes=4 << 20):
    b, c, h, w = x.shape
    assert c == 1, "BlockMaker expects a single-channel image (b, 1, h, w)"
    s = block_size
    assert h % s == 0 and w % s == 0
    hs, ws = h // s, w // s

    dtype = x.dtype
    itemsize = jnp.dtype(dtype).itemsize
    sub_mult = 8 * max(1, 4 // itemsize)          # 8 (f32) / 16 (bf16) / 32 (int8)

    # Free, row-major reshape: row yi of x2 holds original rows yi*s .. yi*s+s-1 concatenated
    # along the lane dim.  No data movement.
    x2 = x.reshape(b, hs, s * w)

    # 0/1 column-permutation matrix from 1-D iotas (O(w) arithmetic, built once):
    #   R[c, d] = 1  iff  d == (c % s) * ws + c // s      (c = xi*s + kj  ->  d = kj*ws + xi)
    src = jnp.arange(w, dtype=jnp.int32)[:, None]
    dst = jnp.arange(w, dtype=jnp.int32)[None, :]
    r = (dst == (src % s) * ws + (src // s)).astype(dtype)

    row_bytes = s * w * itemsize
    hr = _pick_row_tile(hs, sub_mult, row_bytes, target_block_bytes)

    in_block_bytes = hr * row_bytes
    out_block_bytes = in_block_bytes               # same element count
    r_bytes = w * w * itemsize
    vmem_limit = 2 * (in_block_bytes + out_block_bytes) + 2 * r_bytes + (2 << 20)
    vmem_limit = int(max(vmem_limit, 16 << 20))

    kernel = functools.partial(_block_maker_kernel, block_size=s)

    cost = pl.CostEstimate(
        flops=2 * b * h * w * w,                   # s per-strip (hr, w) @ (w, w) matmuls
        transcendentals=0,
        bytes_accessed=2 * b * h * w * itemsize + r_bytes,
    )

    out = pl.pallas_call(
        kernel,
        out_shape=jax.ShapeDtypeStruct((b, s * s, hs, ws), dtype),
        grid_spec=pltpu.PrefetchScalarGridSpec(
            num_scalar_prefetch=0,
            grid=(b, hs // hr),
            in_specs=[
                pl.BlockSpec((1, hr, s * w), lambda i, j: (i, j, 0)),
                pl.BlockSpec((w, w), lambda i, j: (0, 0)),   # resident, never re-fetched
            ],
            out_specs=pl.BlockSpec((1, s * s, hr, ws), lambda i, j: (i, 0, j, 0)),
        ),
        compiler_params=pltpu.CompilerParams(
            dimension_semantics=("parallel", "parallel"),
            vmem_limit_bytes=vmem_limit,
        ),
        cost_estimate=cost,
    )(x2, r)
    return out


def _reference_block_maker(x, block_size=4):
    # Pure-JAX reference of torch.nn.Unfold(k=s, stride=s) + reshape.
    b, c, h, w = x.shape
    s = block_size
    hs, ws = h // s, w // s
    y = x.reshape(b, c, hs, s, ws, s)            # (b, 1, yi, ki, xi, kj)
    y = jnp.transpose(y, (0, 1, 3, 5, 2, 4))     # (b, 1, ki, kj, yi, xi)
    return y.reshape(b, c * s * s, hs, ws)


if __name__ == "__main__":
    key = jax.random.PRNGKey(0)
    block_size = 4

    # Primary small test (module-implied shape).
    b, h, w = 2, 16, 16
    x = jax.random.normal(key, (b, 1, h, w), dtype=jnp.float32)
    out = jax.block_until_ready(block_maker(x, block_size=block_size))
    ref = _reference_block_maker(x, block_size=block_size)
    assert out.shape == (b, block_size * block_size, h // block_size, w // block_size)
    assert jnp.allclose(out, ref, atol=1e-6, rtol=1e-6)

    # Second test: larger image with a small block budget to exercise multi-strip tiling.
    b2, h2, w2 = 2, 128, 128
    x2 = jax.random.normal(jax.random.PRNGKey(0), (b2, 1, h2, w2), dtype=jnp.float32)
    out2 = jax.block_until_ready(
        block_maker(x2, block_size=block_size, target_block_bytes=16 * 1024))
    ref2 = _reference_block_maker(x2, block_size=block_size)
    assert out2.shape == (b2, block_size * block_size, h2 // block_size, w2 // block_size)
    assert jnp.allclose(out2, ref2, atol=1e-6, rtol=1e-6)

    print("KERNEL_OK")
</pallas_src>

<mosaic_0001>
module attributes {stable_mosaic.version = 11 : i64} {
  func.func @_block_maker_kernel(%arg0: i32, %arg1: i32, %arg2: memref<1x4x64xf32, #tpu.memory_space<vmem>>, %arg3: memref<16x16xf32, #tpu.memory_space<vmem>>, %arg4: memref<1x16x4x4xf32, #tpu.memory_space<vmem>>) attributes {dimension_semantics = [#tpu.dimension_semantics<parallel>, #tpu.dimension_semantics<parallel>], iteration_bounds = array<i64: 2, 1>, scalar_prefetch = 0 : i64, scratch_operands = 0 : i64, tpu.core_type = #tpu.core_type<tc>, window_params = [{transform_indices = @transform_0, window_bounds = array<i64: 1, 4, 64>}, {pipeline_mode = #tpu.pipeline_mode<synchronous>, transform_indices = @transform_1, window_bounds = array<i64: 16, 16>}, {transform_indices = @transform_2, window_bounds = array<i64: 1, 16, 4, 4>}]} {
    %c0 = arith.constant 0 : index
    %c0_0 = arith.constant 0 : index
    %c0_1 = arith.constant 0 : index
    %0 = vector.load %arg2[%c0, %c0_0, %c0_1] : memref<1x4x64xf32, #tpu.memory_space<vmem>>, vector<1x4x64xf32>
    %1 = vector.shape_cast %0 : vector<1x4x64xf32> to vector<4x64xf32>
    %c0_2 = arith.constant 0 : index
    %c0_3 = arith.constant 0 : index
    %2 = vector.load %arg3[%c0_2, %c0_3] : memref<16x16xf32, #tpu.memory_space<vmem>>, vector<16x16xf32>
    %3 = vector.extract_strided_slice %1 {offsets = [0, 0], sizes = [4, 16], strides = [1, 1]} : vector<4x64xf32> to vector<4x16xf32>
    %cst = arith.constant dense<0.000000e+00> : vector<4x16xf32>
    %4 = tpu.matmul %3, %2, %cst {dimension_numbers = #tpu.dot_dimension_numbers<[1], [0], [0], [1], [0, 0, 1, 1], [], []>, precision = #tpu.contract_precision<fp32>} : vector<4x16xf32>, vector<16x16xf32>, vector<4x16xf32> -> vector<4x16xf32>
    %5 = vector.extract_strided_slice %4 {offsets = [0, 0], sizes = [4, 4], strides = [1, 1]} : vector<4x16xf32> to vector<4x4xf32>
    %c0_4 = arith.constant 0 : index
    %c0_5 = arith.constant 0 : index
    %c0_6 = arith.constant 0 : index
    %c0_7 = arith.constant 0 : index
    %6 = vector.load %arg4[%c0_4, %c0_5, %c0_6, %c0_7] : memref<1x16x4x4xf32, #tpu.memory_space<vmem>>, vector<1x1x4x4xf32>
    %7 = vector.shape_cast %6 : vector<1x1x4x4xf32> to vector<4x4xf32>
    %8 = vector.shape_cast %5 : vector<4x4xf32> to vector<1x1x4x4xf32>
    tpu.vector_store %arg4[%c0_4, %c0_5, %c0_6, %c0_7], %8 {strides = array<i32>} : memref<1x16x4x4xf32, #tpu.memory_space<vmem>>, vector<1x1x4x4xf32>,
    %9 = vector.extract_strided_slice %4 {offsets = [0, 4], sizes = [4, 4], strides = [1, 1]} : vector<4x16xf32> to vector<4x4xf32>
    %c0_8 = arith.constant 0 : index
    %c1 = arith.constant 1 : index
    %c0_9 = arith.constant 0 : index
    %c0_10 = arith.constant 0 : index
    %10 = vector.load %arg4[%c0_8, %c1, %c0_9, %c0_10] : memref<1x16x4x4xf32, #tpu.memory_space<vmem>>, vector<1x1x4x4xf32>
    %11 = vector.shape_cast %10 : vector<1x1x4x4xf32> to vector<4x4xf32>
    %12 = vector.shape_cast %9 : vector<4x4xf32> to vector<1x1x4x4xf32>
    tpu.vector_store %arg4[%c0_8, %c1, %c0_9, %c0_10], %12 {strides = array<i32>} : memref<1x16x4x4xf32, #tpu.memory_space<vmem>>, vector<1x1x4x4xf32>,
    %13 = vector.extract_strided_slice %4 {offsets = [0, 8], sizes = [4, 4], strides = [1, 1]} : vector<4x16xf32> to vector<4x4xf32>
    %c0_11 = arith.constant 0 : index
    %c2 = arith.constant 2 : index
    %c0_12 = arith.constant 0 : index
    %c0_13 = arith.constant 0 : index
    %14 = vector.load %arg4[%c0_11, %c2, %c0_12, %c0_13] : memref<1x16x4x4xf32, #tpu.memory_space<vmem>>, vector<1x1x4x4xf32>
    %15 = vector.shape_cast %14 : vector<1x1x4x4xf32> to vector<4x4xf32>
    %16 = vector.shape_cast %13 : vector<4x4xf32> to vector<1x1x4x4xf32>
    tpu.vector_store %arg4[%c0_11, %c2, %c0_12, %c0_13], %16 {strides = array<i32>} : memref<1x16x4x4xf32, #tpu.memory_space<vmem>>, vector<1x1x4x4xf32>,
    %17 = vector.extract_strided_slice %4 {offsets = [0, 12], sizes = [4, 4], strides = [1, 1]} : vector<4x16xf32> to vector<4x4xf32>
    %c0_14 = arith.constant 0 : index
    %c3 = arith.constant 3 : index
    %c0_15 = arith.constant 0 : index
    %c0_16 = arith.constant 0 : index
    %18 = vector.load %arg4[%c0_14, %c3, %c0_15, %c0_16] : memref<1x16x4x4xf32, #tpu.memory_space<vmem>>, vector<1x1x4x4xf32>
    %19 = vector.shape_cast %18 : vector<1x1x4x4xf32> to vector<4x4xf32>
    %20 = vector.shape_cast %17 : vector<4x4xf32> to vector<1x1x4x4xf32>
    tpu.vector_store %arg4[%c0_14, %c3, %c0_15, %c0_16], %20 {strides = array<i32>} : memref<1x16x4x4xf32, #tpu.memory_space<vmem>>, vector<1x1x4x4xf32>,
    %21 = vector.extract_strided_slice %1 {offsets = [0, 16], sizes = [4, 16], strides = [1, 1]} : vector<4x64xf32> to vector<4x16xf32>
    %cst_17 = arith.constant dense<0.000000e+00> : vector<4x16xf32>
    %22 = tpu.matmul %21, %2, %cst_17 {dimension_numbers = #tpu.dot_dimension_numbers<[1], [0], [0], [1], [0, 0, 1, 1], [], []>, precision = #tpu.contract_precision<fp32>} : vector<4x16xf32>, vector<16x16xf32>, vector<4x16xf32> -> vector<4x16xf32>
    %23 = vector.extract_strided_slice %22 {offsets = [0, 0], sizes = [4, 4], strides = [1, 1]} : vector<4x16xf32> to vector<4x4xf32>
    %c0_18 = arith.constant 0 : index
    %c4 = arith.constant 4 : index
    %c0_19 = arith.constant 0 : index
    %c0_20 = arith.constant 0 : index
    %24 = vector.load %arg4[%c0_18, %c4, %c0_19, %c0_20] : memref<1x16x4x4xf32, #tpu.memory_space<vmem>>, vector<1x1x4x4xf32>
    %25 = vector.shape_cast %24 : vector<1x1x4x4xf32> to vector<4x4xf32>
    %26 = vector.shape_cast %23 : vector<4x4xf32> to vector<1x1x4x4xf32>
    tpu.vector_store %arg4[%c0_18, %c4, %c0_19, %c0_20], %26 {strides = array<i32>} : memref<1x16x4x4xf32, #tpu.memory_space<vmem>>, vector<1x1x4x4xf32>,
    %27 = vector.extract_strided_slice %22 {offsets = [0, 4], sizes = [4, 4], strides = [1, 1]} : vector<4x16xf32> to vector<4x4xf32>
    %c0_21 = arith.constant 0 : index
    %c5 = arith.constant 5 : index
    %c0_22 = arith.constant 0 : index
    %c0_23 = arith.constant 0 : index
    %28 = vector.load %arg4[%c0_21, %c5, %c0_22, %c0_23] : memref<1x16x4x4xf32, #tpu.memory_space<vmem>>, vector<1x1x4x4xf32>
    %29 = vector.shape_cast %28 : vector<1x1x4x4xf32> to vector<4x4xf32>
    %30 = vector.shape_cast %27 : vector<4x4xf32> to vector<1x1x4x4xf32>
    tpu.vector_store %arg4[%c0_21, %c5, %c0_22, %c0_23], %30 {strides = array<i32>} : memref<1x16x4x4xf32, #tpu.memory_space<vmem>>, vector<1x1x4x4xf32>,
    %31 = vector.extract_strided_slice %22 {offsets = [0, 8], sizes = [4, 4], strides = [1, 1]} : vector<4x16xf32> to vector<4x4xf32>
    %c0_24 = arith.constant 0 : index
    %c6 = arith.constant 6 : index
    %c0_25 = arith.constant 0 : index
    %c0_26 = arith.constant 0 : index
    %32 = vector.load %arg4[%c0_24, %c6, %c0_25, %c0_26] : memref<1x16x4x4xf32, #tpu.memory_space<vmem>>, vector<1x1x4x4xf32>
    %33 = vector.shape_cast %32 : vector<1x1x4x4xf32> to vector<4x4xf32>
    %34 = vector.shape_cast %31 : vector<4x4xf32> to vector<1x1x4x4xf32>
    tpu.vector_store %arg4[%c0_24, %c6, %c0_25, %c0_26], %34 {strides = array<i32>} : memref<1x16x4x4xf32, #tpu.memory_space<vmem>>, vector<1x1x4x4xf32>,
    %35 = vector.extract_strided_slice %22 {offsets = [0, 12], sizes = [4, 4], strides = [1, 1]} : vector<4x16xf32> to vector<4x4xf32>
    %c0_27 = arith.constant 0 : index
    %c7 = arith.constant 7 : index
    %c0_28 = arith.constant 0 : index
    %c0_29 = arith.constant 0 : index
    %36 = vector.load %arg4[%c0_27, %c7, %c0_28, %c0_29] : memref<1x16x4x4xf32, #tpu.memory_space<vmem>>, vector<1x1x4x4xf32>
    %37 = vector.shape_cast %36 : vector<1x1x4x4xf32> to vector<4x4xf32>
    %38 = vector.shape_cast %35 : vector<4x4xf32> to vector<1x1x4x4xf32>
    tpu.vector_store %arg4[%c0_27, %c7, %c0_28, %c0_29], %38 {strides = array<i32>} : memref<1x16x4x4xf32, #tpu.memory_space<vmem>>, vector<1x1x4x4xf32>,
    %39 = vector.extract_strided_slice %1 {offsets = [0, 32], sizes = [4, 16], strides = [1, 1]} : vector<4x64xf32> to vector<4x16xf32>
    %cst_30 = arith.constant dense<0.000000e+00> : vector<4x16xf32>
    %40 = tpu.matmul %39, %2, %cst_30 {dimension_numbers = #tpu.dot_dimension_numbers<[1], [0], [0], [1], [0, 0, 1, 1], [], []>, precision = #tpu.contract_precision<fp32>} : vector<4x16xf32>, vector<16x16xf32>, vector<4x16xf32> -> vector<4x16xf32>
    %41 = vector.extract_strided_slice %40 {offsets = [0, 0], sizes = [4, 4], strides = [1, 1]} : vector<4x16xf32> to vector<4x4xf32>
    %c0_31 = arith.constant 0 : index
    %c8 = arith.constant 8 : index
    %c0_32 = arith.constant 0 : index
    %c0_33 = arith.constant 0 : index
    %42 = vector.load %arg4[%c0_31, %c8, %c0_32, %c0_33] : memref<1x16x4x4xf32, #tpu.memory_space<vmem>>, vector<1x1x4x4xf32>
    %43 = vector.shape_cast %42 : vector<1x1x4x4xf32> to vector<4x4xf32>
    %44 = vector.shape_cast %41 : vector<4x4xf32> to vector<1x1x4x4xf32>
    tpu.vector_store %arg4[%c0_31, %c8, %c0_32, %c0_33], %44 {strides = array<i32>} : memref<1x16x4x4xf32, #tpu.memory_space<vmem>>, vector<1x1x4x4xf32>,
    %45 = vector.extract_strided_slice %40 {offsets = [0, 4], sizes = [4, 4], strides = [1, 1]} : vector<4x16xf32> to vector<4x4xf32>
    %c0_34 = arith.constant 0 : index
    %c9 = arith.constant 9 : index
    %c0_35 = arith.constant 0 : index
    %c0_36 = arith.constant 0 : index
    %46 = vector.load %arg4[%c0_34, %c9, %c0_35, %c0_36] : memref<1x16x4x4xf32, #tpu.memory_space<vmem>>, vector<1x1x4x4xf32>
    %47 = vector.shape_cast %46 : vector<1x1x4x4xf32> to vector<4x4xf32>
    %48 = vector.shape_cast %45 : vector<4x4xf32> to vector<1x1x4x4xf32>
    tpu.vector_store %arg4[%c0_34, %c9, %c0_35, %c0_36], %48 {strides = array<i32>} : memref<1x16x4x4xf32, #tpu.memory_space<vmem>>, vector<1x1x4x4xf32>,
    %49 = vector.extract_strided_slice %40 {offsets = [0, 8], sizes = [4, 4], strides = [1, 1]} : vector<4x16xf32> to vector<4x4xf32>
    %c0_37 = arith.constant 0 : index
    %c10 = arith.constant 10 : index
    %c0_38 = arith.constant 0 : index
    %c0_39 = arith.constant 0 : index
    %50 = vector.load %arg4[%c0_37, %c10, %c0_38, %c0_39] : memref<1x16x4x4xf32, #tpu.memory_space<vmem>>, vector<1x1x4x4xf32>
    %51 = vector.shape_cast %50 : vector<1x1x4x4xf32> to vector<4x4xf32>
    %52 = vector.shape_cast %49 : vector<4x4xf32> to vector<1x1x4x4xf32>
    tpu.vector_store %arg4[%c0_37, %c10, %c0_38, %c0_39], %52 {strides = array<i32>} : memref<1x16x4x4xf32, #tpu.memory_space<vmem>>, vector<1x1x4x4xf32>,
    %53 = vector.extract_strided_slice %40 {offsets = [0, 12], sizes = [4, 4], strides = [1, 1]} : vector<4x16xf32> to vector<4x4xf32>
    %c0_40 = arith.constant 0 : index
    %c11 = arith.constant 11 : index
    %c0_41 = arith.constant 0 : index
    %c0_42 = arith.constant 0 : index
    %54 = vector.load %arg4[%c0_40, %c11, %c0_41, %c0_42] : memref<1x16x4x4xf32, #tpu.memory_space<vmem>>, vector<1x1x4x4xf32>
    %55 = vector.shape_cast %54 : vector<1x1x4x4xf32> to vector<4x4xf32>
    %56 = vector.shape_cast %53 : vector<4x4xf32> to vector<1x1x4x4xf32>
    tpu.vector_store %arg4[%c0_40, %c11, %c0_41, %c0_42], %56 {strides = array<i32>} : memref<1x16x4x4xf32, #tpu.memory_space<vmem>>, vector<1x1x4x4xf32>,
    %57 = vector.extract_strided_slice %1 {offsets = [0, 48], sizes = [4, 16], strides = [1, 1]} : vector<4x64xf32> to vector<4x16xf32>
    %cst_43 = arith.constant dense<0.000000e+00> : vector<4x16xf32>
    %58 = tpu.matmul %57, %2, %cst_43 {dimension_numbers = #tpu.dot_dimension_numbers<[1], [0], [0], [1], [0, 0, 1, 1], [], []>, precision = #tpu.contract_precision<fp32>} : vector<4x16xf32>, vector<16x16xf32>, vector<4x16xf32> -> vector<4x16xf32>
    %59 = vector.extract_strided_slice %58 {offsets = [0, 0], sizes = [4, 4], strides = [1, 1]} : vector<4x16xf32> to vector<4x4xf32>
    %c0_44 = arith.constant 0 : index
    %c12 = arith.constant 12 : index
    %c0_45 = arith.constant 0 : index
    %c0_46 = arith.constant 0 : index
    %60 = vector.load %arg4[%c0_44, %c12, %c0_45, %c0_46] : memref<1x16x4x4xf32, #tpu.memory_space<vmem>>, vector<1x1x4x4xf32>
    %61 = vector.shape_cast %60 : vector<1x1x4x4xf32> to vector<4x4xf32>
    %62 = vector.shape_cast %59 : vector<4x4xf32> to vector<1x1x4x4xf32>
    tpu.vector_store %arg4[%c0_44, %c12, %c0_45, %c0_46], %62 {strides = array<i32>} : memref<1x16x4x4xf32, #tpu.memory_space<vmem>>, vector<1x1x4x4xf32>,
    %63 = vector.extract_strided_slice %58 {offsets = [0, 4], sizes = [4, 4], strides = [1, 1]} : vector<4x16xf32> to vector<4x4xf32>
    %c0_47 = arith.constant 0 : index
    %c13 = arith.constant 13 : index
    %c0_48 = arith.constant 0 : index
    %c0_49 = arith.constant 0 : index
    %64 = vector.load %arg4[%c0_47, %c13, %c0_48, %c0_49] : memref<1x16x4x4xf32, #tpu.memory_space<vmem>>, vector<1x1x4x4xf32>
    %65 = vector.shape_cast %64 : vector<1x1x4x4xf32> to vector<4x4xf32>
    %66 = vector.shape_cast %63 : vector<4x4xf32> to vector<1x1x4x4xf32>
    tpu.vector_store %arg4[%c0_47, %c13, %c0_48, %c0_49], %66 {strides = array<i32>} : memref<1x16x4x4xf32, #tpu.memory_space<vmem>>, vector<1x1x4x4xf32>,
    %67 = vector.extract_strided_slice %58 {offsets = [0, 8], sizes = [4, 4], strides = [1, 1]} : vector<4x16xf32> to vector<4x4xf32>
    %c0_50 = arith.constant 0 : index
    %c14 = arith.constant 14 : index
    %c0_51 = arith.constant 0 : index
    %c0_52 = arith.constant 0 : index
    %68 = vector.load %arg4[%c0_50, %c14, %c0_51, %c0_52] : memref<1x16x4x4xf32, #tpu.memory_space<vmem>>, vector<1x1x4x4xf32>
    %69 = vector.shape_cast %68 : vector<1x1x4x4xf32> to vector<4x4xf32>
    %70 = vector.shape_cast %67 : vector<4x4xf32> to vector<1x1x4x4xf32>
    tpu.vector_store %arg4[%c0_50, %c14, %c0_51, %c0_52], %70 {strides = array<i32>} : memref<1x16x4x4xf32, #tpu.memory_space<vmem>>, vector<1x1x4x4xf32>,
    %71 = vector.extract_strided_slice %58 {offsets = [0, 12], sizes = [4, 4], strides = [1, 1]} : vector<4x16xf32> to vector<4x4xf32>
    %c0_53 = arith.constant 0 : index
    %c15 = arith.constant 15 : index
    %c0_54 = arith.constant 0 : index
    %c0_55 = arith.constant 0 : index
    %72 = vector.load %arg4[%c0_53, %c15, %c0_54, %c0_55] : memref<1x16x4x4xf32, #tpu.memory_space<vmem>>, vector<1x1x4x4xf32>
    %73 = vector.shape_cast %72 : vector<1x1x4x4xf32> to vector<4x4xf32>
    %74 = vector.shape_cast %71 : vector<4x4xf32> to vector<1x1x4x4xf32>
    tpu.vector_store %arg4[%c0_53, %c15, %c0_54, %c0_55], %74 {strides = array<i32>} : memref<1x16x4x4xf32, #tpu.memory_space<vmem>>, vector<1x1x4x4xf32>,
    return
  }
  func.func @transform_0(%arg0: i32, %arg1: i32) -> (i32, i32, i32) {
    %c0_i32 = arith.constant 0 : i32
    %c0_i32_0 = arith.constant 0 : i32
    return %arg0, %arg1, %c0_i32 : i32, i32, i32
  }
  func.func @transform_1(%arg0: i32, %arg1: i32) -> (i32, i32) {
    %c0_i32 = arith.constant 0 : i32
    %c0_i32_0 = arith.constant 0 : i32
    %c0_i32_1 = arith.constant 0 : i32
    return %c0_i32, %c0_i32_0 : i32, i32
  }
  func.func @transform_2(%arg0: i32, %arg1: i32) -> (i32, i32, i32, i32) {
    %c0_i32 = arith.constant 0 : i32
    %c0_i32_0 = arith.constant 0 : i32
    %c0_i32_1 = arith.constant 0 : i32
    return %arg0, %c0_i32, %arg1, %c0_i32_0 : i32, i32, i32, i32
  }
}

</mosaic_0001>

<llo_original>
// kernel: tpu_custom_call.1
$region0: #{tpu_custom_call.1}
  #allocation0 [shape = 'u32[]', space=smem, size = 0x4, offset = 0x4, fixed_abs, tag = 'smem constant byte address 0x4 - core index']
  #allocation1 [shape = 'u32[144,128]{1,0:T(1,128)}', space=vmem, size = 0x12000, scoped, tag = 'internal scratch']
  %s0 = inlined_call_operand.hbm [shape: f32[2,4,64], index: 0, kind: input, shape index: {}]
  %s1 = inlined_call_operand.hbm [shape: f32[16,16], index: 1, kind: input, shape index: {}]
  %s2 = inlined_call_operand.vmem [shape: f32[2,16,4,4], index: 2, kind: output, shape index: {}]
  %s3 = sld [smem:[#allocation0]]
  $region49: #{tpu_custom_call.1} parent=0
    _
  %s5 = ssub.s32 1, %s3
  %s6 = scalar_select 0, %s5, %s3
  $region1: #{tpu_custom_call.1} parent=0
    #allocation2 [shape = 'u8[4096]{0}', space=vmem, size = 0x1000, scoped, tag = 'input window, operand 0']
    #allocation3 [shape = 's32[2]{0}', space=sflag, size = 0x8, scoped, tag = 'scoped memory for tpu_custom_call.1']
    #allocation4 [shape = 'u8[8192]{0}', space=vmem, size = 0x2000, scoped, tag = 'input window, operand 1, single buffered']
    #allocation5 [shape = 's32[1]{0}', space=sflag, size = 0x4, scoped, tag = 'scoped memory for tpu_custom_call.1']
    %7 = vsyncpa [#allocation3], 0
    %s8 = scalar_lea.sflag [#allocation3], 1
    %9 = vsyncpa %s8, 0
    %10 = vsyncpa [#allocation5], 0
    loop: start=0, step=1, limit=4
    $region2: #{tpu_custom_call.1} parent=1 // loop_pre_header
      _
    $region3: #{tpu_custom_call.1} parent=1 // loop_header
      %s12 = sphi 0, %s16
      %p13 = scmp.ge.s32.totalorder %s12, 4
      %s19 = sphi 0, %s31
      %s20 = sphi 0, %s27
      %s21 = sphi 0, %s19
      %s22 = sphi 0, %s20
      %s23 = sphi 0, %s21
      %s24 = sphi 0, %s22
      %s36 = sphi 0, %s38
      %s39 = sphi 0, %s36
      %s40 = sphi 0, %s39
      %s56 = sphi 0, %s40
      %s60 = sphi 0, %s60
      %s62 = sphi 0, %s60
      %s63 = sphi 0, %s62
      %s77 = sphi 0, %s63
      %s85 = sphi 0, %s87
      %s88 = sphi 0, %s85
      %s89 = sphi 0, %s88
      %s105 = sphi 0, %s89
    $region4: #{tpu_custom_call.1} parent=1 // loop_header_branch
      %15 = sbr.rel (%p13) target = $region8
    $region5: #{tpu_custom_call.1} parent=1 // loop_body
      %s17 = ssub.s32 %s12, 1
      %s18 = ssub.s32 %s12, 2
      %s25 = sadd.s32 1, %s20
      %p26 = scmp.ge.s32.totalorder %s25, 1
      %s27 = scalar_select %p26, 0, %s25
      %s28 = sadd.s32 1, %s19
      %s29 = scalar_select %p26, %s28, %s19
      %p30 = scmp.ge.s32.totalorder %s29, 2
      %s31 = scalar_select %p30, 0, %s29
      %s32 = ssub.s32 %s19, %s31
      %s33 = ssub.s32 %s20, %s27
      %s34 = sor.u32 %s32, %s33
      %p35 = scmp.eq.s32.totalorder %s34, 0
      %s37 = sadd.s32 %s36, 1
      %s38 = scalar_select %p35, %s36, %s37
      %p41 = pneg %p35
      %p42 = scmp.eq.s32.totalorder %s12, 1
      %p43 = por %p41, %p42
      %p44 = scmp.ne.s32.totalorder %s36, %s39
      %p45 = scmp.eq.s32.totalorder %s12, 0
      %p46 = por %p44, %p45
      %p47 = scmp.ne.s32.totalorder %s36, %s39
      %p48 = scmp.eq.s32.totalorder %s17, 1
      %p49 = por %p47, %p48
      %p50 = scmp.ne.s32.totalorder %s39, %s40
      %p51 = scmp.eq.s32.totalorder %s17, 0
      %p52 = por %p50, %p51
      %p53 = scmp.ne.s32.totalorder %s39, %s40
      %p54 = scmp.eq.s32.totalorder %s18, 1
      %p55 = por %p53, %p54
      %p57 = scmp.ne.s32.totalorder %s40, %s56
      %p58 = scmp.eq.s32.totalorder %s18, 0
      %p59 = por %p57, %p58
      %s61 = sadd.s32 %s60, 1
      %p64 = scmp.eq.s32.totalorder %s12, 1
      %p65 = scmp.ne.s32.totalorder %s60, %s62
      %p66 = scmp.eq.s32.totalorder %s12, 0
      %p67 = por %p65, %p66
      %p68 = scmp.ne.s32.totalorder %s60, %s62
      %p69 = scmp.eq.s32.totalorder %s17, 1
      %p70 = por %p68, %p69
      %p71 = scmp.ne.s32.totalorder %s62, %s63
      %p72 = scmp.eq.s32.totalorder %s17, 0
      %p73 = por %p71, %p72
      %p74 = scmp.ne.s32.totalorder %s62, %s63
      %p75 = scmp.eq.s32.totalorder %s18, 1
      %p76 = por %p74, %p75
      %p78 = scmp.ne.s32.totalorder %s63, %s77
      %p79 = scmp.eq.s32.totalorder %s18, 0
      %p80 = por %p78, %p79
      %s81 = ssub.s32 %s19, %s31
      %s82 = ssub.s32 %s20, %s27
      %s83 = sor.u32 %s81, %s82
      %p84 = scmp.eq.s32.totalorder %s83, 0
      %s86 = sadd.s32 %s85, 1
      %s87 = scalar_select %p84, %s85, %s86
      %p90 = pneg %p84
      %p91 = scmp.eq.s32.totalorder %s12, 1
      %p92 = por %p90, %p91
      %p93 = scmp.ne.s32.totalorder %s85, %s88
      %p94 = scmp.eq.s32.totalorder %s12, 0
      %p95 = por %p93, %p94
      %p96 = scmp.ne.s32.totalorder %s85, %s88
      %p97 = scmp.eq.s32.totalorder %s17, 1
      %p98 = por %p96, %p97
      %p99 = scmp.ne.s32.totalorder %s88, %s89
      %p100 = scmp.eq.s32.totalorder %s17, 0
      %p101 = por %p99, %p100
      %p102 = scmp.ne.s32.totalorder %s88, %s89
      %p103 = scmp.eq.s32.totalorder %s18, 1
      %p104 = por %p102, %p103
      %p106 = scmp.ne.s32.totalorder %s89, %s105
      %p107 = scmp.eq.s32.totalorder %s18, 0
      %p108 = por %p106, %p107
      %p109 = scmp.le.s32.totalorder 1, %s12
      %p110 = scmp.lt.s32.totalorder %s12, 3
      %p111 = pnand %p109, %p110
      %p112 = pneg %p111
      // Predicated region
      $region9: #{tpu_custom_call.1} parent=5 // pred_check
        _
      $region10: #{tpu_custom_call.1} parent=5 // pred_check_branch
        %114 = sbr.rel (%p111) target = $region12
      $region11: #{tpu_custom_call.1} parent=5 // pred_region
        %s115 = ssub.s32 %s12, 1
        // Predicated region
        $region13: #{tpu_custom_call.1} parent=11 // pred_check
          %p116 = pneg %p73
        $region14: #{tpu_custom_call.1} parent=11 // pred_check_branch
          %118 = sbr.rel (%p116) target = $region16
        $region15: #{tpu_custom_call.1} parent=11 // pred_region
          %s120 = ssub.s32 256, 256
          %121 = vsyncadd [#allocation5], %s120
          %s122 = sshll.u32 [#allocation4], 4
          %s123 = int_to_ptr.vmem [resolvable:$true] %s122
          %128 = dma.hbm_to_vmem [thread:$0]  %s1, 256, %s123, [#allocation5], 128, 128, 8
        $region16: #{tpu_custom_call.1} parent=11 // pred_fallthru
          _
      $region12: #{tpu_custom_call.1} parent=5 // pred_fallthru
        _
      %p129 = scmp.lt.s32.totalorder %s12, 2
      // Predicated region
      $region17: #{tpu_custom_call.1} parent=5 // pred_check
        %p130 = pneg %p129
      $region18: #{tpu_custom_call.1} parent=5 // pred_check_branch
        %132 = sbr.rel (%p130) target = $region20
      $region19: #{tpu_custom_call.1} parent=5 // pred_region
        // Predicated region
        $region21: #{tpu_custom_call.1} parent=19 // pred_check
          %p133 = pneg %p46
        $region22: #{tpu_custom_call.1} parent=19 // pred_check_branch
          %135 = sbr.rel (%p133) target = $region24
        $region23: #{tpu_custom_call.1} parent=19 // pred_region
          %s136 = sand.u32 %s36, 1
          %s137 = scalar_lea.sflag [#allocation3], %s136
          %s138 = sand.u32 %s36, 1
          %s139 = smul.addr %s138, 4
          %s140 = scalar_lea.vmem [#allocation2], %s139
          %s142 = ssub.s32 64, 64
          %143 = vsyncadd %s137, %s142
          %s144 = sadd.s32 %s20, %s19
          %s145 = smul.addr %s144, 64
          %s146 = scalar_lea.hbm %s0, %s145
          %s148 = sshll.u32 %s140, 4
          %s149 = int_to_ptr.vmem [resolvable:$true] %s148
          %151 = dma.hbm_to_vmem [thread:$0]  %s146, 64, %s149, %s137
        $region24: #{tpu_custom_call.1} parent=19 // pred_fallthru
          _
      $region20: #{tpu_custom_call.1} parent=5 // pred_fallthru
        _
      %p152 = scmp.le.s32.totalorder 1, %s12
      %p153 = scmp.lt.s32.totalorder %s12, 3
      %p154 = pnand %p152, %p153
      %p155 = pneg %p154
      // Predicated region
      $region25: #{tpu_custom_call.1} parent=5 // pred_check
        _
      $region26: #{tpu_custom_call.1} parent=5 // pred_check_branch
        %157 = sbr.rel (%p154) target = $region28
      $region27: #{tpu_custom_call.1} parent=5 // pred_region
        %s158 = ssub.s32 %s12, 1
        %s159 = sand.u32 %s39, 1
        %s160 = scalar_lea.sflag [#allocation3], %s159
        %s161 = sand.u32 %s39, 1
        %s162 = smul.addr %s161, 4
        %s163 = scalar_lea.vmem [#allocation2], %s162
        // Predicated region
        $region29: #{tpu_custom_call.1} parent=27 // pred_check
          %p164 = pneg %p52
        $region30: #{tpu_custom_call.1} parent=27 // pred_check_branch
          %166 = sbr.rel (%p164) target = $region32
        $region31: #{tpu_custom_call.1} parent=27 // pred_region
          %167 = dma.done %s160, 64
        $region32: #{tpu_custom_call.1} parent=27 // pred_fallthru
          _
        // Predicated region
        $region33: #{tpu_custom_call.1} parent=27 // pred_check
          %p168 = pneg %p73
        $region34: #{tpu_custom_call.1} parent=27 // pred_check_branch
          %170 = sbr.rel (%p168) target = $region36
        $region35: #{tpu_custom_call.1} parent=27 // pred_region
          %171 = dma.done [#allocation5], 256
        $region36: #{tpu_custom_call.1} parent=27 // pred_fallthru
          _
        %s172 = sand.u32 %s39, 1
        %s173 = scalar_lea.sflag [#allocation3], %s172
        %s174 = sand.u32 %s39, 1
        %s175 = smul.addr %s174, 4
        %s176 = scalar_lea.vmem [#allocation2], %s175
        %p177 = pneg %p52
        %p178 = pneg %p49
        %p179 = pneg %p73
        %p180 = pneg %p70
        %p181 = pneg %p101
        %p182 = pneg %p98
        %p183 = scmp.lt.s32.totalorder %s21, 1
        %s184 = scalar_select %p183, %s21, 1
        %p185 = scmp.lt.s32.totalorder %s22, 0
        %s186 = scalar_select %p185, %s22, 0
        %s187 = smul.addr %s184, 16
        %s188 = sadd.s32 %s186, %s187
        %s189 = smul.addr %s188, 4
        %s190 = scalar_lea.vmem %s2, %s189
        %p191 = scmp.lt.s32.totalorder %s21, 1
        %s192 = scalar_select %p191, %s21, 1
        %p193 = scmp.lt.s32.totalorder %s22, 0
        %s194 = scalar_select %p193, %s22, 0
        %s195 = smul.addr %s192, 16
        %s196 = sadd.s32 %s194, %s195
        %s197 = smul.addr %s196, 4
        %s198 = scalar_lea.vmem %s2, %s197
        %v199 = vld [vmem:[%s163] sm:$0xf]
        %v200 = vld [vmem:[#allocation4] sm:$0xff]
        %v201 = vld [vmem:[#allocation4 + $0x8] sm:$0xff]
        %vm202 = vcmask 130048
        %v204 = vsel %vm202, %v199, 0
        %206 = vmatprep.subr.mxu0 0.0
        %v207 = vand.u32 %v200, 4294901760
        %208 = vmatpush1.msra.mxu0 %v207
        %209 = vmatprep.subr.mxu0 0.0
        %v210 = vand.u32 %v201, 4294901760
        %211 = vmatpush1.msra.mxu0 %v210
        %212 = vmatprep.subr.mxu0 0.0
        %213 = vmatpush1.msra.mxu0 0.0
        %214 = vmatprep.subr.mxu0 0.0
        %215 = vmatpush1.msra.mxu0 0.0
        %216 = vmatprep.subr.mxu0 0.0
        %217 = vmatpush1.msra.mxu0 0.0
        %218 = vmatprep.subr.mxu0 0.0
        %219 = vmatpush1.msra.mxu0 0.0
        %220 = vmatprep.subr.mxu0 0.0
        %221 = vmatpush1.msra.mxu0 0.0
        %222 = vmatprep.subr.mxu0 0.0
        %223 = vmatpush1.msra.mxu0 0.0
        %224 = vmatprep.subr.mxu0 0.0
        %225 = vmatpush1.msra.mxu0 0.0
        %226 = vmatprep.subr.mxu0 0.0
        %227 = vmatpush1.msra.mxu0 0.0
        %228 = vmatprep.subr.mxu0 0.0
        %229 = vmatpush1.msra.mxu0 0.0
        %230 = vmatprep.subr.mxu0 0.0
        %231 = vmatpush1.msra.mxu0 0.0
        %232 = vmatprep.subr.mxu0 0.0
        %233 = vmatpush1.msra.mxu0 0.0
        %234 = vmatprep.subr.mxu0 0.0
        %235 = vmatpush1.msra.mxu0 0.0
        %236 = vmatprep.subr.mxu0 0.0
        %237 = vmatpush1.msra.mxu0 0.0
        %238 = vmatprep.subr.mxu0 0.0
        %239 = vmatpush1.msra.mxu0 0.0
        %240 = vmatprep.subr.mxu0 0.0
        %241 = vmatpush1.msra.mxu0 0.0
        %242 = vmatprep.subr.mxu0 0.0
        %243 = vmatpush1.msra.mxu0 0.0
        %244 = vmatprep.subr.mxu0 0.0
        %245 = vmatpush1.msra.mxu0 0.0
        %246 = vmatprep.subr.mxu0 0.0
        %247 = vmatpush1.msra.mxu0 0.0
        %248 = vmatprep.subr.mxu0 0.0
        %249 = vmatpush1.msra.mxu0 0.0
        %250 = vmatprep.subr.mxu0 0.0
        %251 = vmatpush1.msra.mxu0 0.0
        %252 = vmatprep.subr.mxu0 0.0
        %253 = vmatpush1.msra.mxu0 0.0
        %254 = vmatprep.subr.mxu0 0.0
        %255 = vmatpush1.msra.mxu0 0.0
        %256 = vmatprep.subr.mxu0 0.0
        %257 = vmatpush1.msra.mxu0 0.0
        %258 = vmatprep.subr.mxu0 0.0
        %259 = vmatpush1.msra.mxu0 0.0
        %260 = vmatprep.subr.mxu0 0.0
        %261 = vmatpush1.msra.mxu0 0.0
        %262 = vmatprep.subr.mxu0 0.0
        %263 = vmatpush1.msra.mxu0 0.0
        %264 = vmatprep.subr.mxu0 0.0
        %265 = vmatpush1.msra.mxu0 0.0
        %266 = vmatprep.subr.mxu0 0.0
        %267 = vmatpush1.msra.mxu0 0.0
        %268 = vmatprep.subr.mxu0 0.0
        %269 = vmatpush1.msra.mxu0 0.0
        %270 = vmatprep.subr.mxu0 0.0
        %271 = vmatpush1.msra.mxu0 0.0
        %272 = vmatprep.mubr.f32.mxu0 0.0
        %v273 = vand.u32 %v204, 4294901760
        %v274 = vsub.f32 %v204, %v273
        %v275 = vand.u32 %v274, 4294901760
        %v276 = vsub.f32 %v274, %v275
        %v277 = vand.u32 %v276, 4294901760
        %278 = vmatmul.mubr.f32.gmra.mrb[0].mxu0 %v277
        %v279 = vpop.f32.mrb[0].mxu0
        %v280 = vadd.f32 0.0, %v279
        %v281 = vpop.f32.mrb[0].mxu0
        %282 = vdwg.mxu0
        %283 = vmatprep.subr.mxu0 0.0
        %v284 = vand.u32 %v200, 4294901760
        %v285 = vsub.f32 %v200, %v284
        %v286 = vand.u32 %v285, 4294901760
        %v287 = vsub.f32 %v285, %v286
        %v288 = vand.u32 %v287, 4294901760
        %289 = vmatpush1.msra.mxu0 %v288
        %290 = vmatprep.subr.mxu0 0.0
        %v291 = vand.u32 %v201, 4294901760
        %v292 = vsub.f32 %v201, %v291
        %v293 = vand.u32 %v292, 4294901760
        %v294 = vsub.f32 %v292, %v293
        %v295 = vand.u32 %v294, 4294901760
        %296 = vmatpush1.msra.mxu0 %v295
        %297 = vmatprep.subr.mxu0 0.0
        %298 = vmatpush1.msra.mxu0 0.0
        %299 = vmatprep.subr.mxu0 0.0
        %300 = vmatpush1.msra.mxu0 0.0
        %301 = vmatprep.subr.mxu0 0.0
        %302 = vmatpush1.msra.mxu0 0.0
        %303 = vmatprep.subr.mxu0 0.0
        %304 = vmatpush1.msra.mxu0 0.0
        %305 = vmatprep.subr.mxu0 0.0
        %306 = vmatpush1.msra.mxu0 0.0
        %307 = vmatprep.subr.mxu0 0.0
        %308 = vmatpush1.msra.mxu0 0.0
        %309 = vmatprep.subr.mxu0 0.0
        %310 = vmatpush1.msra.mxu0 0.0
        %311 = vmatprep.subr.mxu0 0.0
        %312 = vmatpush1.msra.mxu0 0.0
        %313 = vmatprep.subr.mxu0 0.0
        %314 = vmatpush1.msra.mxu0 0.0
        %315 = vmatprep.subr.mxu0 0.0
        %316 = vmatpush1.msra.mxu0 0.0
        %317 = vmatprep.subr.mxu0 0.0
        %318 = vmatpush1.msra.mxu0 0.0
        %319 = vmatprep.subr.mxu0 0.0
        %320 = vmatpush1.msra.mxu0 0.0
        %321 = vmatprep.subr.mxu0 0.0
        %322 = vmatpush1.msra.mxu0 0.0
        %323 = vmatprep.subr.mxu0 0.0
        %324 = vmatpush1.msra.mxu0 0.0
        %325 = vmatprep.subr.mxu0 0.0
        %326 = vmatpush1.msra.mxu0 0.0
        %327 = vmatprep.subr.mxu0 0.0
        %328 = vmatpush1.msra.mxu0 0.0
        %329 = vmatprep.subr.mxu0 0.0
        %330 = vmatpush1.msra.mxu0 0.0
        %331 = vmatprep.subr.mxu0 0.0
        %332 = vmatpush1.msra.mxu0 0.0
        %333 = vmatprep.subr.mxu0 0.0
        %334 = vmatpush1.msra.mxu0 0.0
        %335 = vmatprep.subr.mxu0 0.0
        %336 = vmatpush1.msra.mxu0 0.0
        %337 = vmatprep.subr.mxu0 0.0
        %338 = vmatpush1.msra.mxu0 0.0
        %339 = vmatprep.subr.mxu0 0.0
        %340 = vmatpush1.msra.mxu0 0.0
        %341 = vmatprep.subr.mxu0 0.0
        %342 = vmatpush1.msra.mxu0 0.0
        %343 = vmatprep.subr.mxu0 0.0
        %344 = vmatpush1.msra.mxu0 0.0
        %345 = vmatprep.subr.mxu0 0.0
        %346 = vmatpush1.msra.mxu0 0.0
        %347 = vmatprep.subr.mxu0 0.0
        %348 = vmatpush1.msra.mxu0 0.0
        %349 = vmatprep.subr.mxu0 0.0
        %350 = vmatpush1.msra.mxu0 0.0
        %351 = vmatprep.subr.mxu0 0.0
        %352 = vmatpush1.msra.mxu0 0.0
        %353 = vmatprep.subr.mxu0 0.0
        %354 = vmatpush1.msra.mxu0 0.0
        %355 = vmatprep.subr.mxu0 0.0
        %356 = vmatpush1.msra.mxu0 0.0
        %357 = vmatprep.mubr.f32.mxu0 0.0
        %v358 = vand.u32 %v204, 4294901760
        %359 = vmatmul.mubr.f32.gmra.mrb[0].mxu0 %v358
        %v360 = vpop.f32.mrb[0].mxu0
        %v361 = vadd.f32 %v280, %v360
        %v362 = vpop.f32.mrb[0].mxu0
        %363 = vdwg.mxu0
        %364 = vmatprep.subr.mxu0 0.0
        %v365 = vand.u32 %v200, 4294901760
        %v366 = vsub.f32 %v200, %v365
        %367 = vmatpush1.msra.mxu0 %v366
        %368 = vmatprep.subr.mxu0 0.0
        %v369 = vand.u32 %v201, 4294901760
        %v370 = vsub.f32 %v201, %v369
        %371 = vmatpush1.msra.mxu0 %v370
        %372 = vmatprep.subr.mxu0 0.0
        %373 = vmatpush1.msra.mxu0 0.0
        %374 = vmatprep.subr.mxu0 0.0
        %375 = vmatpush1.msra.mxu0 0.0
        %376 = vmatprep.subr.mxu0 0.0
        %377 = vmatpush1.msra.mxu0 0.0
        %378 = vmatprep.subr.mxu0 0.0
        %379 = vmatpush1.msra.mxu0 0.0
        %380 = vmatprep.subr.mxu0 0.0
        %381 = vmatpush1.msra.mxu0 0.0
        %382 = vmatprep.subr.mxu0 0.0
        %383 = vmatpush1.msra.mxu0 0.0
        %384 = vmatprep.subr.mxu0 0.0
        %385 = vmatpush1.msra.mxu0 0.0
        %386 = vmatprep.subr.mxu0 0.0
        %387 = vmatpush1.msra.mxu0 0.0
        %388 = vmatprep.subr.mxu0 0.0
        %389 = vmatpush1.msra.mxu0 0.0
        %390 = vmatprep.subr.mxu0 0.0
        %391 = vmatpush1.msra.mxu0 0.0
        %392 = vmatprep.subr.mxu0 0.0
        %393 = vmatpush1.msra.mxu0 0.0
        %394 = vmatprep.subr.mxu0 0.0
        %395 = vmatpush1.msra.mxu0 0.0
        %396 = vmatprep.subr.mxu0 0.0
        %397 = vmatpush1.msra.mxu0 0.0
        %398 = vmatprep.subr.mxu0 0.0
        %399 = vmatpush1.msra.mxu0 0.0
        %400 = vmatprep.subr.mxu0 0.0
        %401 = vmatpush1.msra.mxu0 0.0
        %402 = vmatprep.subr.mxu0 0.0
        %403 = vmatpush1.msra.mxu0 0.0
        %404 = vmatprep.subr.mxu0 0.0
        %405 = vmatpush1.msra.mxu0 0.0
        %406 = vmatprep.subr.mxu0 0.0
        %407 = vmatpush1.msra.mxu0 0.0
        %408 = vmatprep.subr.mxu0 0.0
        %409 = vmatpush1.msra.mxu0 0.0
        %410 = vmatprep.subr.mxu0 0.0
        %411 = vmatpush1.msra.mxu0 0.0
        %412 = vmatprep.subr.mxu0 0.0
        %413 = vmatpush1.msra.mxu0 0.0
        %414 = vmatprep.subr.mxu0 0.0
        %415 = vmatpush1.msra.mxu0 0.0
        %416 = vmatprep.subr.mxu0 0.0
        %417 = vmatpush1.msra.mxu0 0.0
        %418 = vmatprep.subr.mxu0 0.0
        %419 = vmatpush1.msra.mxu0 0.0
        %420 = vmatprep.subr.mxu0 0.0
        %421 = vmatpush1.msra.mxu0 0.0
        %422 = vmatprep.subr.mxu0 0.0
        %423 = vmatpush1.msra.mxu0 0.0
        %424 = vmatprep.subr.mxu0 0.0
        %425 = vmatpush1.msra.mxu0 0.0
        %426 = vmatprep.subr.mxu0 0.0
        %427 = vmatpush1.msra.mxu0 0.0
        %428 = vmatprep.subr.mxu0 0.0
        %429 = vmatpush1.msra.mxu0 0.0
        %430 = vmatprep.subr.mxu0 0.0
        %431 = vmatpush1.msra.mxu0 0.0
        %432 = vmatprep.mubr.f32.mxu0 0.0
        %v433 = vand.u32 %v204, 4294901760
        %v434 = vsub.f32 %v204, %v433
        %435 = vmatmul.mubr.f32.gmra.mrb[0].mxu0 %v434
        %v436 = vpop.f32.mrb[0].mxu0
        %v437 = vadd.f32 %v361, %v436
        %v438 = vpop.f32.mrb[0].mxu0
        %439 = vdwg.mxu0
        %440 = vmatprep.subr.mxu0 0.0
        %v441 = vand.u32 %v200, 4294901760
        %442 = vmatpush1.msra.mxu0 %v441
        %443 = vmatprep.subr.mxu0 0.0
        %v444 = vand.u32 %v201, 4294901760
        %445 = vmatpush1.msra.mxu0 %v444
        %446 = vmatprep.subr.mxu0 0.0
        %447 = vmatpush1.msra.mxu0 0.0
        %448 = vmatprep.subr.mxu0 0.0
        %449 = vmatpush1.msra.mxu0 0.0
        %450 = vmatprep.subr.mxu0 0.0
        %451 = vmatpush1.msra.mxu0 0.0
        %452 = vmatprep.subr.mxu0 0.0
        %453 = vmatpush1.msra.mxu0 0.0
        %454 = vmatprep.subr.mxu0 0.0
        %455 = vmatpush1.msra.mxu0 0.0
        %456 = vmatprep.subr.mxu0 0.0
        %457 = vmatpush1.msra.mxu0 0.0
        %458 = vmatprep.subr.mxu0 0.0
        %459 = vmatpush1.msra.mxu0 0.0
        %460 = vmatprep.subr.mxu0 0.0
        %461 = vmatpush1.msra.mxu0 0.0
        %462 = vmatprep.subr.mxu0 0.0
        %463 = vmatpush1.msra.mxu0 0.0
        %464 = vmatprep.subr.mxu0 0.0
        %465 = vmatpush1.msra.mxu0 0.0
        %466 = vmatprep.subr.mxu0 0.0
        %467 = vmatpush1.msra.mxu0 0.0
        %468 = vmatprep.subr.mxu0 0.0
        %469 = vmatpush1.msra.mxu0 0.0
        %470 = vmatprep.subr.mxu0 0.0
        %471 = vmatpush1.msra.mxu0 0.0
        %472 = vmatprep.subr.mxu0 0.0
        %473 = vmatpush1.msra.mxu0 0.0
        %474 = vmatprep.subr.mxu0 0.0
        %475 = vmatpush1.msra.mxu0 0.0
        %476 = vmatprep.subr.mxu0 0.0
        %477 = vmatpush1.msra.mxu0 0.0
        %478 = vmatprep.subr.mxu0 0.0
        %479 = vmatpush1.msra.mxu0 0.0
        %480 = vmatprep.subr.mxu0 0.0
        %481 = vmatpush1.msra.mxu0 0.0
        %482 = vmatprep.subr.mxu0 0.0
        %483 = vmatpush1.msra.mxu0 0.0
        %484 = vmatprep.subr.mxu0 0.0
        %485 = vmatpush1.msra.mxu0 0.0
        %486 = vmatprep.subr.mxu0 0.0
        %487 = vmatpush1.msra.mxu0 0.0
        %488 = vmatprep.subr.mxu0 0.0
        %489 = vmatpush1.msra.mxu0 0.0
        %490 = vmatprep.subr.mxu0 0.0
        %491 = vmatpush1.msra.mxu0 0.0
        %492 = vmatprep.subr.mxu0 0.0
        %493 = vmatpush1.msra.mxu0 0.0
        %494 = vmatprep.subr.mxu0 0.0
        %495 = vmatpush1.msra.mxu0 0.0
        %496 = vmatprep.subr.mxu0 0.0
        %497 = vmatpush1.msra.mxu0 0.0
        %498 = vmatprep.subr.mxu0 0.0
        %499 = vmatpush1.msra.mxu0 0.0
        %500 = vmatprep.subr.mxu0 0.0
        %501 = vmatpush1.msra.mxu0 0.0
        %502 = vmatprep.subr.mxu0 0.0
        %503 = vmatpush1.msra.mxu0 0.0
        %504 = vmatprep.subr.mxu0 0.0
        %505 = vmatpush1.msra.mxu0 0.0
        %506 = vmatprep.mubr.f32.mxu0 0.0
        %v507 = vand.u32 %v204, 4294901760
        %v508 = vsub.f32 %v204, %v507
        %v509 = vand.u32 %v508, 4294901760
        %510 = vmatmul.mubr.f32.gmra.mrb[0].mxu0 %v509
        %v511 = vpop.f32.mrb[0].mxu0
        %v512 = vadd.f32 %v437, %v511
        %v513 = vpop.f32.mrb[0].mxu0
        %514 = vdwg.mxu0
        %515 = vmatprep.subr.mxu0 0.0
        %v516 = vand.u32 %v200, 4294901760
        %v517 = vsub.f32 %v200, %v516
        %v518 = vand.u32 %v517, 4294901760
        %519 = vmatpush1.msra.mxu0 %v518
        %520 = vmatprep.subr.mxu0 0.0
        %v521 = vand.u32 %v201, 4294901760
        %v522 = vsub.f32 %v201, %v521
        %v523 = vand.u32 %v522, 4294901760
        %524 = vmatpush1.msra.mxu0 %v523
        %525 = vmatprep.subr.mxu0 0.0
        %526 = vmatpush1.msra.mxu0 0.0
        %527 = vmatprep.subr.mxu0 0.0
        %528 = vmatpush1.msra.mxu0 0.0
        %529 = vmatprep.subr.mxu0 0.0
        %530 = vmatpush1.msra.mxu0 0.0
        %531 = vmatprep.subr.mxu0 0.0
        %532 = vmatpush1.msra.mxu0 0.0
        %533 = vmatprep.subr.mxu0 0.0
        %534 = vmatpush1.msra.mxu0 0.0
        %535 = vmatprep.subr.mxu0 0.0
        %536 = vmatpush1.msra.mxu0 0.0
        %537 = vmatprep.subr.mxu0 0.0
        %538 = vmatpush1.msra.mxu0 0.0
        %539 = vmatprep.subr.mxu0 0.0
        %540 = vmatpush1.msra.mxu0 0.0
        %541 = vmatprep.subr.mxu0 0.0
        %542 = vmatpush1.msra.mxu0 0.0
        %543 = vmatprep.subr.mxu0 0.0
        %544 = vmatpush1.msra.mxu0 0.0
        %545 = vmatprep.subr.mxu0 0.0
        %546 = vmatpush1.msra.mxu0 0.0
        %547 = vmatprep.subr.mxu0 0.0
        %548 = vmatpush1.msra.mxu0 0.0
        %549 = vmatprep.subr.mxu0 0.0
        %550 = vmatpush1.msra.mxu0 0.0
        %551 = vmatprep.subr.mxu0 0.0
        %552 = vmatpush1.msra.mxu0 0.0
        %553 = vmatprep.subr.mxu0 0.0
        %554 = vmatpush1.msra.mxu0 0.0
        %555 = vmatprep.subr.mxu0 0.0
        %556 = vmatpush1.msra.mxu0 0.0
        %557 = vmatprep.subr.mxu0 0.0
        %558 = vmatpush1.msra.mxu0 0.0
        %559 = vmatprep.subr.mxu0 0.0
        %560 = vmatpush1.msra.mxu0 0.0
        %561 = vmatprep.subr.mxu0 0.0
        %562 = vmatpush1.msra.mxu0 0.0
        %563 = vmatprep.subr.mxu0 0.0
        %564 = vmatpush1.msra.mxu0 0.0
        %565 = vmatprep.subr.mxu0 0.0
        %566 = vmatpush1.msra.mxu0 0.0
        %567 = vmatprep.subr.mxu0 0.0
        %568 = vmatpush1.msra.mxu0 0.0
        %569 = vmatprep.subr.mxu0 0.0
        %570 = vmatpush1.msra.mxu0 0.0
        %571 = vmatprep.subr.mxu0 0.0
        %572 = vmatpush1.msra.mxu0 0.0
        %573 = vmatprep.subr.mxu0 0.0
        %574 = vmatpush1.msra.mxu0 0.0
        %575 = vmatprep.subr.mxu0 0.0
        %576 = vmatpush1.msra.mxu0 0.0
        %577 = vmatprep.subr.mxu0 0.0
        %578 = vmatpush1.msra.mxu0 0.0
        %579 = vmatprep.subr.mxu0 0.0
        %580 = vmatpush1.msra.mxu0 0.0
        %581 = vmatprep.subr.mxu0 0.0
        %582 = vmatpush1.msra.mxu0 0.0
        %583 = vmatprep.subr.mxu0 0.0
        %584 = vmatpush1.msra.mxu0 0.0
        %585 = vmatprep.mubr.f32.mxu0 0.0
        %v586 = vand.u32 %v204, 4294901760
        %587 = vmatmul.mubr.f32.gmra.mrb[0].mxu0 %v586
        %v588 = vpop.f32.mrb[0].mxu0
        %v589 = vadd.f32 %v512, %v588
        %v590 = vpop.f32.mrb[0].mxu0
        %591 = vdwg.mxu0
        %592 = vmatprep.subr.mxu0 0.0
        %v593 = vand.u32 %v200, 4294901760
        %594 = vmatpush1.msra.mxu0 %v593
        %595 = vmatprep.subr.mxu0 0.0
        %v596 = vand.u32 %v201, 4294901760
        %597 = vmatpush1.msra.mxu0 %v596
        %598 = vmatprep.subr.mxu0 0.0
        %599 = vmatpush1.msra.mxu0 0.0
        %600 = vmatprep.subr.mxu0 0.0
        %601 = vmatpush1.msra.mxu0 0.0
        %602 = vmatprep.subr.mxu0 0.0
        %603 = vmatpush1.msra.mxu0 0.0
        %604 = vmatprep.subr.mxu0 0.0
        %605 = vmatpush1.msra.mxu0 0.0
        %606 = vmatprep.subr.mxu0 0.0
        %607 = vmatpush1.msra.mxu0 0.0
        %608 = vmatprep.subr.mxu0 0.0
        %609 = vmatpush1.msra.mxu0 0.0
        %610 = vmatprep.subr.mxu0 0.0
        %611 = vmatpush1.msra.mxu0 0.0
        %612 = vmatprep.subr.mxu0 0.0
        %613 = vmatpush1.msra.mxu0 0.0
        %614 = vmatprep.subr.mxu0 0.0
        %615 = vmatpush1.msra.mxu0 0.0
        %616 = vmatprep.subr.mxu0 0.0
        %617 = vmatpush1.msra.mxu0 0.0
        %618 = vmatprep.subr.mxu0 0.0
        %619 = vmatpush1.msra.mxu0 0.0
        %620 = vmatprep.subr.mxu0 0.0
        %621 = vmatpush1.msra.mxu0 0.0
        %622 = vmatprep.subr.mxu0 0.0
        %623 = vmatpush1.msra.mxu0 0.0
        %624 = vmatprep.subr.mxu0 0.0
        %625 = vmatpush1.msra.mxu0 0.0
        %626 = vmatprep.subr.mxu0 0.0
        %627 = vmatpush1.msra.mxu0 0.0
        %628 = vmatprep.subr.mxu0 0.0
        %629 = vmatpush1.msra.mxu0 0.0
        %630 = vmatprep.subr.mxu0 0.0
        %631 = vmatpush1.msra.mxu0 0.0
        %632 = vmatprep.subr.mxu0 0.0
        %633 = vmatpush1.msra.mxu0 0.0
        %634 = vmatprep.subr.mxu0 0.0
        %635 = vmatpush1.msra.mxu0 0.0
        %636 = vmatprep.subr.mxu0 0.0
        %637 = vmatpush1.msra.mxu0 0.0
        %638 = vmatprep.subr.mxu0 0.0
        %639 = vmatpush1.msra.mxu0 0.0
        %640 = vmatprep.subr.mxu0 0.0
        %641 = vmatpush1.msra.mxu0 0.0
        %642 = vmatprep.subr.mxu0 0.0
        %643 = vmatpush1.msra.mxu0 0.0
        %644 = vmatprep.subr.mxu0 0.0
        %645 = vmatpush1.msra.mxu0 0.0
        %646 = vmatprep.subr.mxu0 0.0
        %647 = vmatpush1.msra.mxu0 0.0
        %648 = vmatprep.subr.mxu0 0.0
        %649 = vmatpush1.msra.mxu0 0.0
        %650 = vmatprep.subr.mxu0 0.0
        %651 = vmatpush1.msra.mxu0 0.0
        %652 = vmatprep.subr.mxu0 0.0
        %653 = vmatpush1.msra.mxu0 0.0
        %654 = vmatprep.subr.mxu0 0.0
        %655 = vmatpush1.msra.mxu0 0.0
        %656 = vmatprep.subr.mxu0 0.0
        %657 = vmatpush1.msra.mxu0 0.0
        %658 = vmatprep.mubr.f32.mxu0 0.0
        %v659 = vand.u32 %v204, 4294901760
        %660 = vmatmul.mubr.f32.gmra.mrb[0].mxu0 %v659
        %v661 = vpop.f32.mrb[0].mxu0
        %v662 = vadd.f32 %v589, %v661
        %v663 = vpop.f32.mrb[0].mxu0
        %664 = vdwg.mxu0
        %vm665 = vcmask 27648
        %666 = vst.msk [vmem:[%s198] sm:$0xf] %vm665, %v662
        %668 = vrot.lane.b32.xlu0 %v662, 124
        %v669 = vpop.permute.xlu0 %668
        %s671 = scalar_lea.vmem %s198, 4
        %672 = vst.msk [vmem:[%s671] sm:$0xf] %vm665, %v669
        %673 = vrot.lane.b32.xlu0 %v662, 120
        %v674 = vpop.permute.xlu0 %673
        %s676 = scalar_lea.vmem %s198, 8
        %677 = vst.msk [vmem:[%s676] sm:$0xf] %vm665, %v674
        %678 = vrot.lane.b32.xlu0 %v662, 116
        %v679 = vpop.permute.xlu0 %678
        %s681 = scalar_lea.vmem %s198, 12
        %682 = vst.msk [vmem:[%s681] sm:$0xf] %vm665, %v679
        %683 = vrot.lane.b32.xlu0 %v199, 112
        %v684 = vpop.permute.xlu0 %683
        %v685 = vsel %vm202, %v684, 0
        %687 = vmatprep.subr.mxu0 0.0
        %v688 = vand.u32 %v200, 4294901760
        %689 = vmatpush1.msra.mxu0 %v688
        %690 = vmatprep.subr.mxu0 0.0
        %v691 = vand.u32 %v201, 4294901760
        %692 = vmatpush1.msra.mxu0 %v691
        %693 = vmatprep.subr.mxu0 0.0
        %694 = vmatpush1.msra.mxu0 0.0
        %695 = vmatprep.subr.mxu0 0.0
        %696 = vmatpush1.msra.mxu0 0.0
        %697 = vmatprep.subr.mxu0 0.0
        %698 = vmatpush1.msra.mxu0 0.0
        %699 = vmatprep.subr.mxu0 0.0
        %700 = vmatpush1.msra.mxu0 0.0
        %701 = vmatprep.subr.mxu0 0.0
        %702 = vmatpush1.msra.mxu0 0.0
        %703 = vmatprep.subr.mxu0 0.0
        %704 = vmatpush1.msra.mxu0 0.0
        %705 = vmatprep.subr.mxu0 0.0
        %706 = vmatpush1.msra.mxu0 0.0
        %707 = vmatprep.subr.mxu0 0.0
        %708 = vmatpush1.msra.mxu0 0.0
        %709 = vmatprep.subr.mxu0 0.0
        %710 = vmatpush1.msra.mxu0 0.0
        %711 = vmatprep.subr.mxu0 0.0
        %712 = vmatpush1.msra.mxu0 0.0
        %713 = vmatprep.subr.mxu0 0.0
        %714 = vmatpush1.msra.mxu0 0.0
        %715 = vmatprep.subr.mxu0 0.0
        %716 = vmatpush1.msra.mxu0 0.0
        %717 = vmatprep.subr.mxu0 0.0
        %718 = vmatpush1.msra.mxu0 0.0
        %719 = vmatprep.subr.mxu0 0.0
        %720 = vmatpush1.msra.mxu0 0.0
        %721 = vmatprep.subr.mxu0 0.0
        %722 = vmatpush1.msra.mxu0 0.0
        %723 = vmatprep.subr.mxu0 0.0
        %724 = vmatpush1.msra.mxu0 0.0
        %725 = vmatprep.subr.mxu0 0.0
        %726 = vmatpush1.msra.mxu0 0.0
        %727 = vmatprep.subr.mxu0 0.0
        %728 = vmatpush1.msra.mxu0 0.0
        %729 = vmatprep.subr.mxu0 0.0
        %730 = vmatpush1.msra.mxu0 0.0
        %731 = vmatprep.subr.mxu0 0.0
        %732 = vmatpush1.msra.mxu0 0.0
        %733 = vmatprep.subr.mxu0 0.0
        %734 = vmatpush1.msra.mxu0 0.0
        %735 = vmatprep.subr.mxu0 0.0
        %736 = vmatpush1.msra.mxu0 0.0
        %737 = vmatprep.subr.mxu0 0.0
        %738 = vmatpush1.msra.mxu0 0.0
        %739 = vmatprep.subr.mxu0 0.0
        %740 = vmatpush1.msra.mxu0 0.0
        %741 = vmatprep.subr.mxu0 0.0
        %742 = vmatpush1.msra.mxu0 0.0
        %743 = vmatprep.subr.mxu0 0.0
        %744 = vmatpush1.msra.mxu0 0.0
        %745 = vmatprep.subr.mxu0 0.0
        %746 = vmatpush1.msra.mxu0 0.0
        %747 = vmatprep.subr.mxu0 0.0
        %748 = vmatpush1.msra.mxu0 0.0
        %749 = vmatprep.subr.mxu0 0.0
        %750 = vmatpush1.msra.mxu0 0.0
        %751 = vmatprep.subr.mxu0 0.0
        %752 = vmatpush1.msra.mxu0 0.0
        %753 = vmatprep.mubr.f32.mxu0 0.0
        %v754 = vand.u32 %v685, 4294901760
        %v755 = vsub.f32 %v685, %v754
        %v756 = vand.u32 %v755, 4294901760
        %v757 = vsub.f32 %v755, %v756
        %v758 = vand.u32 %v757, 4294901760
        %759 = vmatmul.mubr.f32.gmra.mrb[0].mxu0 %v758
        %v760 = vpop.f32.mrb[0].mxu0
        %v761 = vadd.f32 0.0, %v760
        %v762 = vpop.f32.mrb[0].mxu0
        %763 = vdwg.mxu0
        %764 = vmatprep.subr.mxu0 0.0
        %v765 = vand.u32 %v200, 4294901760
        %v766 = vsub.f32 %v200, %v765
        %v767 = vand.u32 %v766, 4294901760
        %v768 = vsub.f32 %v766, %v767
        %v769 = vand.u32 %v768, 4294901760
        %770 = vmatpush1.msra.mxu0 %v769
        %771 = vmatprep.subr.mxu0 0.0
        %v772 = vand.u32 %v201, 4294901760
        %v773 = vsub.f32 %v201, %v772
        %v774 = vand.u32 %v773, 4294901760
        %v775 = vsub.f32 %v773, %v774
        %v776 = vand.u32 %v775, 4294901760
        %777 = vmatpush1.msra.mxu0 %v776
        %778 = vmatprep.subr.mxu0 0.0
        %779 = vmatpush1.msra.mxu0 0.0
        %780 = vmatprep.subr.mxu0 0.0
        %781 = vmatpush1.msra.mxu0 0.0
        %782 = vmatprep.subr.mxu0 0.0
        %783 = vmatpush1.msra.mxu0 0.0
        %784 = vmatprep.subr.mxu0 0.0
        %785 = vmatpush1.msra.mxu0 0.0
        %786 = vmatprep.subr.mxu0 0.0
        %787 = vmatpush1.msra.mxu0 0.0
        %788 = vmatprep.subr.mxu0 0.0
        %789 = vmatpush1.msra.mxu0 0.0
        %790 = vmatprep.subr.mxu0 0.0
        %791 = vmatpush1.msra.mxu0 0.0
        %792 = vmatprep.subr.mxu0 0.0
        %793 = vmatpush1.msra.mxu0 0.0
        %794 = vmatprep.subr.mxu0 0.0
        %795 = vmatpush1.msra.mxu0 0.0
        %796 = vmatprep.subr.mxu0 0.0
        %797 = vmatpush1.msra.mxu0 0.0
        %798 = vmatprep.subr.mxu0 0.0
        %799 = vmatpush1.msra.mxu0 0.0
        %800 = vmatprep.subr.mxu0 0.0
        %801 = vmatpush1.msra.mxu0 0.0
        %802 = vmatprep.subr.mxu0 0.0
        %803 = vmatpush1.msra.mxu0 0.0
        %804 = vmatprep.subr.mxu0 0.0
        %805 = vmatpush1.msra.mxu0 0.0
        %806 = vmatprep.subr.mxu0 0.0
        %807 = vmatpush1.msra.mxu0 0.0
        %808 = vmatprep.subr.mxu0 0.0
        %809 = vmatpush1.msra.mxu0 0.0
        %810 = vmatprep.subr.mxu0 0.0
        %811 = vmatpush1.msra.mxu0 0.0
        %812 = vmatprep.subr.mxu0 0.0
        %813 = vmatpush1.msra.mxu0 0.0
        %814 = vmatprep.subr.mxu0 0.0
        %815 = vmatpush1.msra.mxu0 0.0
        %816 = vmatprep.subr.mxu0 0.0
        %817 = vmatpush1.msra.mxu0 0.0
        %818 = vmatprep.subr.mxu0 0.0
        %819 = vmatpush1.msra.mxu0 0.0
        %820 = vmatprep.subr.mxu0 0.0
        %821 = vmatpush1.msra.mxu0 0.0
        %822 = vmatprep.subr.mxu0 0.0
        %823 = vmatpush1.msra.mxu0 0.0
        %824 = vmatprep.subr.mxu0 0.0
        %825 = vmatpush1.msra.mxu0 0.0
        %826 = vmatprep.subr.mxu0 0.0
        %827 = vmatpush1.msra.mxu0 0.0
        %828 = vmatprep.subr.mxu0 0.0
        %829 = vmatpush1.msra.mxu0 0.0
        %830 = vmatprep.subr.mxu0 0.0
        %831 = vmatpush1.msra.mxu0 0.0
        %832 = vmatprep.subr.mxu0 0.0
        %833 = vmatpush1.msra.mxu0 0.0
        %834 = vmatprep.subr.mxu0 0.0
        %835 = vmatpush1.msra.mxu0 0.0
        %836 = vmatprep.subr.mxu0 0.0
        %837 = vmatpush1.msra.mxu0 0.0
        %838 = vmatprep.mubr.f32.mxu0 0.0
        %v839 = vand.u32 %v685, 4294901760
        %840 = vmatmul.mubr.f32.gmra.mrb[0].mxu0 %v839
        %v841 = vpop.f32.mrb[0].mxu0
        %v842 = vadd.f32 %v761, %v841
        %v843 = vpop.f32.mrb[0].mxu0
        %844 = vdwg.mxu0
        %845 = vmatprep.subr.mxu0 0.0
        %v846 = vand.u32 %v200, 4294901760
        %v847 = vsub.f32 %v200, %v846
        %848 = vmatpush1.msra.mxu0 %v847
        %849 = vmatprep.subr.mxu0 0.0
        %v850 = vand.u32 %v201, 4294901760
        %v851 = vsub.f32 %v201, %v850
        %852 = vmatpush1.msra.mxu0 %v851
        %853 = vmatprep.subr.mxu0 0.0
        %854 = vmatpush1.msra.mxu0 0.0
        %855 = vmatprep.subr.mxu0 0.0
        %856 = vmatpush1.msra.mxu0 0.0
        %857 = vmatprep.subr.mxu0 0.0
        %858 = vmatpush1.msra.mxu0 0.0
        %859 = vmatprep.subr.mxu0 0.0
        %860 = vmatpush1.msra.mxu0 0.0
        %861 = vmatprep.subr.mxu0 0.0
        %862 = vmatpush1.msra.mxu0 0.0
        %863 = vmatprep.subr.mxu0 0.0
        %864 = vmatpush1.msra.mxu0 0.0
        %865 = vmatprep.subr.mxu0 0.0
        %866 = vmatpush1.msra.mxu0 0.0
        %867 = vmatprep.subr.mxu0 0.0
        %868 = vmatpush1.msra.mxu0 0.0
        %869 = vmatprep.subr.mxu0 0.0
        %870 = vmatpush1.msra.mxu0 0.0
        %871 = vmatprep.subr.mxu0 0.0
        %872 = vmatpush1.msra.mxu0 0.0
        %873 = vmatprep.subr.mxu0 0.0
        %874 = vmatpush1.msra.mxu0 0.0
        %875 = vmatprep.subr.mxu0 0.0
        %876 = vmatpush1.msra.mxu0 0.0
        %877 = vmatprep.subr.mxu0 0.0
        %878 = vmatpush1.msra.mxu0 0.0
        %879 = vmatprep.subr.mxu0 0.0
        %880 = vmatpush1.msra.mxu0 0.0
        %881 = vmatprep.subr.mxu0 0.0
        %882 = vmatpush1.msra.mxu0 0.0
        %883 = vmatprep.subr.mxu0 0.0
        %884 = vmatpush1.msra.mxu0 0.0
        %885 = vmatprep.subr.mxu0 0.0
        %886 = vmatpush1.msra.mxu0 0.0
        %887 = vmatprep.subr.mxu0 0.0
        %888 = vmatpush1.msra.mxu0 0.0
        %889 = vmatprep.subr.mxu0 0.0
        %890 = vmatpush1.msra.mxu0 0.0
        %891 = vmatprep.subr.mxu0 0.0
        %892 = vmatpush1.msra.mxu0 0.0
        %893 = vmatprep.subr.mxu0 0.0
        %894 = vmatpush1.msra.mxu0 0.0
        %895 = vmatprep.subr.mxu0 0.0
        %896 = vmatpush1.msra.mxu0 0.0
        %897 = vmatprep.subr.mxu0 0.0
        %898 = vmatpush1.msra.mxu0 0.0
        %899 = vmatprep.subr.mxu0 0.0
        %900 = vmatpush1.msra.mxu0 0.0
        %901 = vmatprep.subr.mxu0 0.0
        %902 = vmatpush1.msra.mxu0 0.0
        %903 = vmatprep.subr.mxu0 0.0
        %904 = vmatpush1.msra.mxu0 0.0
        %905 = vmatprep.subr.mxu0 0.0
        %906 = vmatpush1.msra.mxu0 0.0
        %907 = vmatprep.subr.mxu0 0.0
        %908 = vmatpush1.msra.mxu0 0.0
        %909 = vmatprep.subr.mxu0 0.0
        %910 = vmatpush1.msra.mxu0 0.0
        %911 = vmatprep.subr.mxu0 0.0
        %912 = vmatpush1.msra.mxu0 0.0
        %913 = vmatprep.mubr.f32.mxu0 0.0
        %v914 = vand.u32 %v685, 4294901760
        %v915 = vsub.f32 %v685, %v914
        %916 = vmatmul.mubr.f32.gmra.mrb[0].mxu0 %v915
        %v917 = vpop.f32.mrb[0].mxu0
        %v918 = vadd.f32 %v842, %v917
        %v919 = vpop.f32.mrb[0].mxu0
        %920 = vdwg.mxu0
        %921 = vmatprep.subr.mxu0 0.0
        %v922 = vand.u32 %v200, 4294901760
        %923 = vmatpush1.msra.mxu0 %v922
        %924 = vmatprep.subr.mxu0 0.0
        %v925 = vand.u32 %v201, 4294901760
        %926 = vmatpush1.msra.mxu0 %v925
        %927 = vmatprep.subr.mxu0 0.0
        %928 = vmatpush1.msra.mxu0 0.0
        %929 = vmatprep.subr.mxu0 0.0
        %930 = vmatpush1.msra.mxu0 0.0
        %931 = vmatprep.subr.mxu0 0.0
        %932 = vmatpush1.msra.mxu0 0.0
        %933 = vmatprep.subr.mxu0 0.0
        %934 = vmatpush1.msra.mxu0 0.0
        %935 = vmatprep.subr.mxu0 0.0
        %936 = vmatpush1.msra.mxu0 0.0
        %937 = vmatprep.subr.mxu0 0.0
        %938 = vmatpush1.msra.mxu0 0.0
        %939 = vmatprep.subr.mxu0 0.0
        %940 = vmatpush1.msra.mxu0 0.0
        %941 = vmatprep.subr.mxu0 0.0
        %942 = vmatpush1.msra.mxu0 0.0
        %943 = vmatprep.subr.mxu0 0.0
        %944 = vmatpush1.msra.mxu0 0.0
        %945 = vmatprep.subr.mxu0 0.0
        %946 = vmatpush1.msra.mxu0 0.0
        %947 = vmatprep.subr.mxu0 0.0
        %948 = vmatpush1.msra.mxu0 0.0
        %949 = vmatprep.subr.mxu0 0.0
        %950 = vmatpush1.msra.mxu0 0.0
        %951 = vmatprep.subr.mxu0 0.0
        %952 = vmatpush1.msra.mxu0 0.0
        %953 = vmatprep.subr.mxu0 0.0
        %954 = vmatpush1.msra.mxu0 0.0
        %955 = vmatprep.subr.mxu0 0.0
        %956 = vmatpush1.msra.mxu0 0.0
        %957 = vmatprep.subr.mxu0 0.0
        %958 = vmatpush1.msra.mxu0 0.0
        %959 = vmatprep.subr.mxu0 0.0
        %960 = vmatpush1.msra.mxu0 0.0
        %961 = vmatprep.subr.mxu0 0.0
        %962 = vmatpush1.msra.mxu0 0.0
        %963 = vmatprep.subr.mxu0 0.0
        %964 = vmatpush1.msra.mxu0 0.0
        %965 = vmatprep.subr.mxu0 0.0
        %966 = vmatpush1.msra.mxu0 0.0
        %967 = vmatprep.subr.mxu0 0.0
        %968 = vmatpush1.msra.mxu0 0.0
        %969 = vmatprep.subr.mxu0 0.0
        %970 = vmatpush1.msra.mxu0 0.0
        %971 = vmatprep.subr.mxu0 0.0
        %972 = vmatpush1.msra.mxu0 0.0
        %973 = vmatprep.subr.mxu0 0.0
        %974 = vmatpush1.msra.mxu0 0.0
        %975 = vmatprep.subr.mxu0 0.0
        %976 = vmatpush1.msra.mxu0 0.0
        %977 = vmatprep.subr.mxu0 0.0
        %978 = vmatpush1.msra.mxu0 0.0
        %979 = vmatprep.subr.mxu0 0.0
        %980 = vmatpush1.msra.mxu0 0.0
        %981 = vmatprep.subr.mxu0 0.0
        %982 = vmatpush1.msra.mxu0 0.0
        %983 = vmatprep.subr.mxu0 0.0
        %984 = vmatpush1.msra.mxu0 0.0
        %985 = vmatprep.subr.mxu0 0.0
        %986 = vmatpush1.msra.mxu0 0.0
        %987 = vmatprep.mubr.f32.mxu0 0.0
        %v988 = vand.u32 %v685, 4294901760
        %v989 = vsub.f32 %v685, %v988
        %v990 = vand.u32 %v989, 4294901760
        %991 = vmatmul.mubr.f32.gmra.mrb[0].mxu0 %v990
        %v992 = vpop.f32.mrb[0].mxu0
        %v993 = vadd.f32 %v918, %v992
        %v994 = vpop.f32.mrb[0].mxu0
        %995 = vdwg.mxu0
        %996 = vmatprep.subr.mxu0 0.0
        %v997 = vand.u32 %v200, 4294901760
        %v998 = vsub.f32 %v200, %v997
        %v999 = vand.u32 %v998, 4294901760
        %1000 = vmatpush1.msra.mxu0 %v999
        %1001 = vmatprep.subr.mxu0 0.0
        %v1002 = vand.u32 %v201, 4294901760
        %v1003 = vsub.f32 %v201, %v1002
        %v1004 = vand.u32 %v1003, 4294901760
        %1005 = vmatpush1.msra.mxu0 %v1004
        %1006 = vmatprep.subr.mxu0 0.0
        %1007 = vmatpush1.msra.mxu0 0.0
        %1008 = vmatprep.subr.mxu0 0.0
        %1009 = vmatpush1.msra.mxu0 0.0
        %1010 = vmatprep.subr.mxu0 0.0
        %1011 = vmatpush1.msra.mxu0 0.0
        %1012 = vmatprep.subr.mxu0 0.0
        %1013 = vmatpush1.msra.mxu0 0.0
        %1014 = vmatprep.subr.mxu0 0.0
        %1015 = vmatpush1.msra.mxu0 0.0
        %1016 = vmatprep.subr.mxu0 0.0
        %1017 = vmatpush1.msra.mxu0 0.0
        %1018 = vmatprep.subr.mxu0 0.0
        %1019 = vmatpush1.msra.mxu0 0.0
        %1020 = vmatprep.subr.mxu0 0.0
        %1021 = vmatpush1.msra.mxu0 0.0
        %1022 = vmatprep.subr.mxu0 0.0
        %1023 = vmatpush1.msra.mxu0 0.0
        %1024 = vmatprep.subr.mxu0 0.0
        %1025 = vmatpush1.msra.mxu0 0.0
        %1026 = vmatprep.subr.mxu0 0.0
        %1027 = vmatpush1.msra.mxu0 0.0
        %1028 = vmatprep.subr.mxu0 0.0
        %1029 = vmatpush1.msra.mxu0 0.0
        %1030 = vmatprep.subr.mxu0 0.0
        %1031 = vmatpush1.msra.mxu0 0.0
        %1032 = vmatprep.subr.mxu0 0.0
        %1033 = vmatpush1.msra.mxu0 0.0
        %1034 = vmatprep.subr.mxu0 0.0
        %1035 = vmatpush1.msra.mxu0 0.0
        %1036 = vmatprep.subr.mxu0 0.0
        %1037 = vmatpush1.msra.mxu0 0.0
        %1038 = vmatprep.subr.mxu0 0.0
        %1039 = vmatpush1.msra.mxu0 0.0
        %1040 = vmatprep.subr.mxu0 0.0
        %1041 = vmatpush1.msra.mxu0 0.0
        %1042 = vmatprep.subr.mxu0 0.0
        %1043 = vmatpush1.msra.mxu0 0.0
        %1044 = vmatprep.subr.mxu0 0.0
        %1045 = vmatpush1.msra.mxu0 0.0
        %1046 = vmatprep.subr.mxu0 0.0
        %1047 = vmatpush1.msra.mxu0 0.0
        %1048 = vmatprep.subr.mxu0 0.0
        %1049 = vmatpush1.msra.mxu0 0.0
        %1050 = vmatprep.subr.mxu0 0.0
        %1051 = vmatpush1.msra.mxu0 0.0
        %1052 = vmatprep.subr.mxu0 0.0
        %1053 = vmatpush1.msra.mxu0 0.0
        %1054 = vmatprep.subr.mxu0 0.0
        %1055 = vmatpush1.msra.mxu0 0.0
        %1056 = vmatprep.subr.mxu0 0.0
        %1057 = vmatpush1.msra.mxu0 0.0
        %1058 = vmatprep.subr.mxu0 0.0
        %1059 = vmatpush1.msra.mxu0 0.0
        %1060 = vmatprep.subr.mxu0 0.0
        %1061 = vmatpush1.msra.mxu0 0.0
        %1062 = vmatprep.subr.mxu0 0.0
        %1063 = vmatpush1.msra.mxu0 0.0
        %1064 = vmatprep.subr.mxu0 0.0
        %1065 = vmatpush1.msra.mxu0 0.0
        %1066 = vmatprep.mubr.f32.mxu0 0.0
        %v1067 = vand.u32 %v685, 4294901760
        %1068 = vmatmul.mubr.f32.gmra.mrb[0].mxu0 %v1067
        %v1069 = vpop.f32.mrb[0].mxu0
        %v1070 = vadd.f32 %v993, %v1069
        %v1071 = vpop.f32.mrb[0].mxu0
        %1072 = vdwg.mxu0
        %1073 = vmatprep.subr.mxu0 0.0
        %v1074 = vand.u32 %v200, 4294901760
        %1075 = vmatpush1.msra.mxu0 %v1074
        %1076 = vmatprep.subr.mxu0 0.0
        %v1077 = vand.u32 %v201, 4294901760
        %1078 = vmatpush1.msra.mxu0 %v1077
        %1079 = vmatprep.subr.mxu0 0.0
        %1080 = vmatpush1.msra.mxu0 0.0
        %1081 = vmatprep.subr.mxu0 0.0
        %1082 = vmatpush1.msra.mxu0 0.0
        %1083 = vmatprep.subr.mxu0 0.0
        %1084 = vmatpush1.msra.mxu0 0.0
        %1085 = vmatprep.subr.mxu0 0.0
        %1086 = vmatpush1.msra.mxu0 0.0
        %1087 = vmatprep.subr.mxu0 0.0
        %1088 = vmatpush1.msra.mxu0 0.0
        %1089 = vmatprep.subr.mxu0 0.0
        %1090 = vmatpush1.msra.mxu0 0.0
        %1091 = vmatprep.subr.mxu0 0.0
        %1092 = vmatpush1.msra.mxu0 0.0
        %1093 = vmatprep.subr.mxu0 0.0
        %1094 = vmatpush1.msra.mxu0 0.0
        %1095 = vmatprep.subr.mxu0 0.0
        %1096 = vmatpush1.msra.mxu0 0.0
        %1097 = vmatprep.subr.mxu0 0.0
        %1098 = vmatpush1.msra.mxu0 0.0
        %1099 = vmatprep.subr.mxu0 0.0
        %1100 = vmatpush1.msra.mxu0 0.0
        %1101 = vmatprep.subr.mxu0 0.0
        %1102 = vmatpush1.msra.mxu0 0.0
        %1103 = vmatprep.subr.mxu0 0.0
        %1104 = vmatpush1.msra.mxu0 0.0
        %1105 = vmatprep.subr.mxu0 0.0
        %1106 = vmatpush1.msra.mxu0 0.0
        %1107 = vmatprep.subr.mxu0 0.0
        %1108 = vmatpush1.msra.mxu0 0.0
        %1109 = vmatprep.subr.mxu0 0.0
        %1110 = vmatpush1.msra.mxu0 0.0
        %1111 = vmatprep.subr.mxu0 0.0
        %1112 = vmatpush1.msra.mxu0 0.0
        %1113 = vmatprep.subr.mxu0 0.0
        %1114 = vmatpush1.msra.mxu0 0.0
        %1115 = vmatprep.subr.mxu0 0.0
        %1116 = vmatpush1.msra.mxu0 0.0
        %1117 = vmatprep.subr.mxu0 0.0
        %1118 = vmatpush1.msra.mxu0 0.0
        %1119 = vmatprep.subr.mxu0 0.0
        %1120 = vmatpush1.msra.mxu0 0.0
        %1121 = vmatprep.subr.mxu0 0.0
        %1122 = vmatpush1.msra.mxu0 0.0
        %1123 = vmatprep.subr.mxu0 0.0
        %1124 = vmatpush1.msra.mxu0 0.0
        %1125 = vmatprep.subr.mxu0 0.0
        %1126 = vmatpush1.msra.mxu0 0.0
        %1127 = vmatprep.subr.mxu0 0.0
        %1128 = vmatpush1.msra.mxu0 0.0
        %1129 = vmatprep.subr.mxu0 0.0
        %1130 = vmatpush1.msra.mxu0 0.0
        %1131 = vmatprep.subr.mxu0 0.0
        %1132 = vmatpush1.msra.mxu0 0.0
        %1133 = vmatprep.subr.mxu0 0.0
        %1134 = vmatpush1.msra.mxu0 0.0
        %1135 = vmatprep.subr.mxu0 0.0
        %1136 = vmatpush1.msra.mxu0 0.0
        %1137 = vmatprep.subr.mxu0 0.0
        %1138 = vmatpush1.msra.mxu0 0.0
        %1139 = vmatprep.mubr.f32.mxu0 0.0
        %v1140 = vand.u32 %v685, 4294901760
        %1141 = vmatmul.mubr.f32.gmra.mrb[0].mxu0 %v1140
        %v1142 = vpop.f32.mrb[0].mxu0
        %v1143 = vadd.f32 %v1070, %v1142
        %v1144 = vpop.f32.mrb[0].mxu0
        %1145 = vdwg.mxu0
        %s1146 = scalar_lea.vmem %s198, 16
        %1147 = vst.msk [vmem:[%s1146] sm:$0xf] %vm665, %v1143
        %1149 = vrot.lane.b32.xlu0 %v1143, 124
        %v1150 = vpop.permute.xlu0 %1149
        %s1152 = scalar_lea.vmem %s198, 20
        %1153 = vst.msk [vmem:[%s1152] sm:$0xf] %vm665, %v1150
        %1154 = vrot.lane.b32.xlu0 %v1143, 120
        %v1155 = vpop.permute.xlu0 %1154
        %s1157 = scalar_lea.vmem %s198, 24
        %1158 = vst.msk [vmem:[%s1157] sm:$0xf] %vm665, %v1155
        %1159 = vrot.lane.b32.xlu0 %v1143, 116
        %v1160 = vpop.permute.xlu0 %1159
        %s1162 = scalar_lea.vmem %s198, 28
        %1163 = vst.msk [vmem:[%s1162] sm:$0xf] %vm665, %v1160
        %1164 = vrot.lane.b32.xlu0 %v199, 96
        %v1165 = vpop.permute.xlu0 %1164
        %v1166 = vsel %vm202, %v1165, 0
        %1168 = vmatprep.subr.mxu0 0.0
        %v1169 = vand.u32 %v200, 4294901760
        %1170 = vmatpush1.msra.mxu0 %v1169
        %1171 = vmatprep.subr.mxu0 0.0
        %v1172 = vand.u32 %v201, 4294901760
        %1173 = vmatpush1.msra.mxu0 %v1172
        %1174 = vmatprep.subr.mxu0 0.0
        %1175 = vmatpush1.msra.mxu0 0.0
        %1176 = vmatprep.subr.mxu0 0.0
        %1177 = vmatpush1.msra.mxu0 0.0
        %1178 = vmatprep.subr.mxu0 0.0
        %1179 = vmatpush1.msra.mxu0 0.0
        %1180 = vmatprep.subr.mxu0 0.0
        %1181 = vmatpush1.msra.mxu0 0.0
        %1182 = vmatprep.subr.mxu0 0.0
        %1183 = vmatpush1.msra.mxu0 0.0
        %1184 = vmatprep.subr.mxu0 0.0
        %1185 = vmatpush1.msra.mxu0 0.0
        %1186 = vmatprep.subr.mxu0 0.0
        %1187 = vmatpush1.msra.mxu0 0.0
        %1188 = vmatprep.subr.mxu0 0.0
        %1189 = vmatpush1.msra.mxu0 0.0
        %1190 = vmatprep.subr.mxu0 0.0
        %1191 = vmatpush1.msra.mxu0 0.0
        %1192 = vmatprep.subr.mxu0 0.0
        %1193 = vmatpush1.msra.mxu0 0.0
        %1194 = vmatprep.subr.mxu0 0.0
        %1195 = vmatpush1.msra.mxu0 0.0
        %1196 = vmatprep.subr.mxu0 0.0
        %1197 = vmatpush1.msra.mxu0 0.0
        %1198 = vmatprep.subr.mxu0 0.0
        %1199 = vmatpush1.msra.mxu0 0.0
        %1200 = vmatprep.subr.mxu0 0.0
        %1201 = vmatpush1.msra.mxu0 0.0
        %1202 = vmatprep.subr.mxu0 0.0
        %1203 = vmatpush1.msra.mxu0 0.0
        %1204 = vmatprep.subr.mxu0 0.0
        %1205 = vmatpush1.msra.mxu0 0.0
        %1206 = vmatprep.subr.mxu0 0.0
        %1207 = vmatpush1.msra.mxu0 0.0
        %1208 = vmatprep.subr.mxu0 0.0
        %1209 = vmatpush1.msra.mxu0 0.0
        %1210 = vmatprep.subr.mxu0 0.0
        %1211 = vmatpush1.msra.mxu0 0.0
        %1212 = vmatprep.subr.mxu0 0.0
        %1213 = vmatpush1.msra.mxu0 0.0
        %1214 = vmatprep.subr.mxu0 0.0
        %1215 = vmatpush1.msra.mxu0 0.0
        %1216 = vmatprep.subr.mxu0 0.0
        %1217 = vmatpush1.msra.mxu0 0.0
        %1218 = vmatprep.subr.mxu0 0.0
        %1219 = vmatpush1.msra.mxu0 0.0
        %1220 = vmatprep.subr.mxu0 0.0
        %1221 = vmatpush1.msra.mxu0 0.0
        %1222 = vmatprep.subr.mxu0 0.0
        %1223 = vmatpush1.msra.mxu0 0.0
        %1224 = vmatprep.subr.mxu0 0.0
        %1225 = vmatpush1.msra.mxu0 0.0
        %1226 = vmatprep.subr.mxu0 0.0
        %1227 = vmatpush1.msra.mxu0 0.0
        %1228 = vmatprep.subr.mxu0 0.0
        %1229 = vmatpush1.msra.mxu0 0.0
        %1230 = vmatprep.subr.mxu0 0.0
        %1231 = vmatpush1.msra.mxu0 0.0
        %1232 = vmatprep.subr.mxu0 0.0
        %1233 = vmatpush1.msra.mxu0 0.0
        %1234 = vmatprep.mubr.f32.mxu0 0.0
        %v1235 = vand.u32 %v1166, 4294901760
        %v1236 = vsub.f32 %v1166, %v1235
        %v1237 = vand.u32 %v1236, 4294901760
        %v1238 = vsub.f32 %v1236, %v1237
        %v1239 = vand.u32 %v1238, 4294901760
        %1240 = vmatmul.mubr.f32.gmra.mrb[0].mxu0 %v1239
        %v1241 = vpop.f32.mrb[0].mxu0
        %v1242 = vadd.f32 0.0, %v1241
        %v1243 = vpop.f32.mrb[0].mxu0
        %1244 = vdwg.mxu0
        %1245 = vmatprep.subr.mxu0 0.0
        %v1246 = vand.u32 %v200, 4294901760
        %v1247 = vsub.f32 %v200, %v1246
        %v1248 = vand.u32 %v1247, 4294901760
        %v1249 = vsub.f32 %v1247, %v1248
        %v1250 = vand.u32 %v1249, 4294901760
        %1251 = vmatpush1.msra.mxu0 %v1250
        %1252 = vmatprep.subr.mxu0 0.0
        %v1253 = vand.u32 %v201, 4294901760
        %v1254 = vsub.f32 %v201, %v1253
        %v1255 = vand.u32 %v1254, 4294901760
        %v1256 = vsub.f32 %v1254, %v1255
        %v1257 = vand.u32 %v1256, 4294901760
        %1258 = vmatpush1.msra.mxu0 %v1257
        %1259 = vmatprep.subr.mxu0 0.0
        %1260 = vmatpush1.msra.mxu0 0.0
        %1261 = vmatprep.subr.mxu0 0.0
        %1262 = vmatpush1.msra.mxu0 0.0
        %1263 = vmatprep.subr.mxu0 0.0
        %1264 = vmatpush1.msra.mxu0 0.0
        %1265 = vmatprep.subr.mxu0 0.0
        %1266 = vmatpush1.msra.mxu0 0.0
        %1267 = vmatprep.subr.mxu0 0.0
        %1268 = vmatpush1.msra.mxu0 0.0
        %1269 = vmatprep.subr.mxu0 0.0
        %1270 = vmatpush1.msra.mxu0 0.0
        %1271 = vmatprep.subr.mxu0 0.0
        %1272 = vmatpush1.msra.mxu0 0.0
        %1273 = vmatprep.subr.mxu0 0.0
        %1274 = vmatpush1.msra.mxu0 0.0
        %1275 = vmatprep.subr.mxu0 0.0
        %1276 = vmatpush1.msra.mxu0 0.0
        %1277 = vmatprep.subr.mxu0 0.0
        %1278 = vmatpush1.msra.mxu0 0.0
        %1279 = vmatprep.subr.mxu0 0.0
        %1280 = vmatpush1.msra.mxu0 0.0
        %1281 = vmatprep.subr.mxu0 0.0
        %1282 = vmatpush1.msra.mxu0 0.0
        %1283 = vmatprep.subr.mxu0 0.0
        %1284 = vmatpush1.msra.mxu0 0.0
        %1285 = vmatprep.subr.mxu0 0.0
        %1286 = vmatpush1.msra.mxu0 0.0
        %1287 = vmatprep.subr.mxu0 0.0
        %1288 = vmatpush1.msra.mxu0 0.0
        %1289 = vmatprep.subr.mxu0 0.0
        %1290 = vmatpush1.msra.mxu0 0.0
        %1291 = vmatprep.subr.mxu0 0.0
        %1292 = vmatpush1.msra.mxu0 0.0
        %1293 = vmatprep.subr.mxu0 0.0
        %1294 = vmatpush1.msra.mxu0 0.0
        %1295 = vmatprep.subr.mxu0 0.0
        %1296 = vmatpush1.msra.mxu0 0.0
        %1297 = vmatprep.subr.mxu0 0.0
        %1298 = vmatpush1.msra.mxu0 0.0
        %1299 = vmatprep.subr.mxu0 0.0
        %1300 = vmatpush1.msra.mxu0 0.0
        %1301 = vmatprep.subr.mxu0 0.0
        %1302 = vmatpush1.msra.mxu0 0.0
        %1303 = vmatprep.subr.mxu0 0.0
        %1304 = vmatpush1.msra.mxu0 0.0
        %1305 = vmatprep.subr.mxu0 0.0
        %1306 = vmatpush1.msra.mxu0 0.0
        %1307 = vmatprep.subr.mxu0 0.0
        %1308 = vmatpush1.msra.mxu0 0.0
        %1309 = vmatprep.subr.mxu0 0.0
        %1310 = vmatpush1.msra.mxu0 0.0
        %1311 = vmatprep.subr.mxu0 0.0
        %1312 = vmatpush1.msra.mxu0 0.0
        %1313 = vmatprep.subr.mxu0 0.0
        %1314 = vmatpush1.msra.mxu0 0.0
        %1315 = vmatprep.subr.mxu0 0.0
        %1316 = vmatpush1.msra.mxu0 0.0
        %1317 = vmatprep.subr.mxu0 0.0
        %1318 = vmatpush1.msra.mxu0 0.0
        %1319 = vmatprep.mubr.f32.mxu0 0.0
        %v1320 = vand.u32 %v1166, 4294901760
        %1321 = vmatmul.mubr.f32.gmra.mrb[0].mxu0 %v1320
        %v1322 = vpop.f32.mrb[0].mxu0
        %v1323 = vadd.f32 %v1242, %v1322
        %v1324 = vpop.f32.mrb[0].mxu0
        %1325 = vdwg.mxu0
        %1326 = vmatprep.subr.mxu0 0.0
        %v1327 = vand.u32 %v200, 4294901760
        %v1328 = vsub.f32 %v200, %v1327
        %1329 = vmatpush1.msra.mxu0 %v1328
        %1330 = vmatprep.subr.mxu0 0.0
        %v1331 = vand.u32 %v201, 4294901760
        %v1332 = vsub.f32 %v201, %v1331
        %1333 = vmatpush1.msra.mxu0 %v1332
        %1334 = vmatprep.subr.mxu0 0.0
        %1335 = vmatpush1.msra.mxu0 0.0
        %1336 = vmatprep.subr.mxu0 0.0
        %1337 = vmatpush1.msra.mxu0 0.0
        %1338 = vmatprep.subr.mxu0 0.0
        %1339 = vmatpush1.msra.mxu0 0.0
        %1340 = vmatprep.subr.mxu0 0.0
        %1341 = vmatpush1.msra.mxu0 0.0
        %1342 = vmatprep.subr.mxu0 0.0
        %1343 = vmatpush1.msra.mxu0 0.0
        %1344 = vmatprep.subr.mxu0 0.0
        %1345 = vmatpush1.msra.mxu0 0.0
        %1346 = vmatprep.subr.mxu0 0.0
        %1347 = vmatpush1.msra.mxu0 0.0
        %1348 = vmatprep.subr.mxu0 0.0
        %1349 = vmatpush1.msra.mxu0 0.0
        %1350 = vmatprep.subr.mxu0 0.0
        %1351 = vmatpush1.msra.mxu0 0.0
        %1352 = vmatprep.subr.mxu0 0.0
        %1353 = vmatpush1.msra.mxu0 0.0
        %1354 = vmatprep.subr.mxu0 0.0
        %1355 = vmatpush1.msra.mxu0 0.0
        %1356 = vmatprep.subr.mxu0 0.0
        %1357 = vmatpush1.msra.mxu0 0.0
        %1358 = vmatprep.subr.mxu0 0.0
        %1359 = vmatpush1.msra.mxu0 0.0
        %1360 = vmatprep.subr.mxu0 0.0
        %1361 = vmatpush1.msra.mxu0 0.0
        %1362 = vmatprep.subr.mxu0 0.0
        %1363 = vmatpush1.msra.mxu0 0.0
        %1364 = vmatprep.subr.mxu0 0.0
        %1365 = vmatpush1.msra.mxu0 0.0
        %1366 = vmatprep.subr.mxu0 0.0
        %1367 = vmatpush1.msra.mxu0 0.0
        %1368 = vmatprep.subr.mxu0 0.0
        %1369 = vmatpush1.msra.mxu0 0.0
        %1370 = vmatprep.subr.mxu0 0.0
        %1371 = vmatpush1.msra.mxu0 0.0
        %1372 = vmatprep.subr.mxu0 0.0
        %1373 = vmatpush1.msra.mxu0 0.0
        %1374 = vmatprep.subr.mxu0 0.0
        %1375 = vmatpush1.msra.mxu0 0.0
        %1376 = vmatprep.subr.mxu0 0.0
        %1377 = vmatpush1.msra.mxu0 0.0
        %1378 = vmatprep.subr.mxu0 0.0
        %1379 = vmatpush1.msra.mxu0 0.0
        %1380 = vmatprep.subr.mxu0 0.0
        %1381 = vmatpush1.msra.mxu0 0.0
        %1382 = vmatprep.subr.mxu0 0.0
        %1383 = vmatpush1.msra.mxu0 0.0
        %1384 = vmatprep.subr.mxu0 0.0
        %1385 = vmatpush1.msra.mxu0 0.0
        %1386 = vmatprep.subr.mxu0 0.0
        %1387 = vmatpush1.msra.mxu0 0.0
        %1388 = vmatprep.subr.mxu0 0.0
        %1389 = vmatpush1.msra.mxu0 0.0
        %1390 = vmatprep.subr.mxu0 0.0
        %1391 = vmatpush1.msra.mxu0 0.0
        %1392 = vmatprep.subr.mxu0 0.0
        %1393 = vmatpush1.msra.mxu0 0.0
        %1394 = vmatprep.mubr.f32.mxu0 0.0
        %v1395 = vand.u32 %v1166, 4294901760
        %v1396 = vsub.f32 %v1166, %v1395
        %1397 = vmatmul.mubr.f32.gmra.mrb[0].mxu0 %v1396
        %v1398 = vpop.f32.mrb[0].mxu0
        %v1399 = vadd.f32 %v1323, %v1398
        %v1400 = vpop.f32.mrb[0].mxu0
        %1401 = vdwg.mxu0
        %1402 = vmatprep.subr.mxu0 0.0
        %v1403 = vand.u32 %v200, 4294901760
        %1404 = vmatpush1.msra.mxu0 %v1403
        %1405 = vmatprep.subr.mxu0 0.0
        %v1406 = vand.u32 %v201, 4294901760
        %1407 = vmatpush1.msra.mxu0 %v1406
        %1408 = vmatprep.subr.mxu0 0.0
        %1409 = vmatpush1.msra.mxu0 0.0
        %1410 = vmatprep.subr.mxu0 0.0
        %1411 = vmatpush1.msra.mxu0 0.0
        %1412 = vmatprep.subr.mxu0 0.0
        %1413 = vmatpush1.msra.mxu0 0.0
        %1414 = vmatprep.subr.mxu0 0.0
        %1415 = vmatpush1.msra.mxu0 0.0
        %1416 = vmatprep.subr.mxu0 0.0
        %1417 = vmatpush1.msra.mxu0 0.0
        %1418 = vmatprep.subr.mxu0 0.0
        %1419 = vmatpush1.msra.mxu0 0.0
        %1420 = vmatprep.subr.mxu0 0.0
        %1421 = vmatpush1.msra.mxu0 0.0
        %1422 = vmatprep.subr.mxu0 0.0
        %1423 = vmatpush1.msra.mxu0 0.0
        %1424 = vmatprep.subr.mxu0 0.0
        %1425 = vmatpush1.msra.mxu0 0.0
        %1426 = vmatprep.subr.mxu0 0.0
        %1427 = vmatpush1.msra.mxu0 0.0
        %1428 = vmatprep.subr.mxu0 0.0
        %1429 = vmatpush1.msra.mxu0 0.0
        %1430 = vmatprep.subr.mxu0 0.0
        %1431 = vmatpush1.msra.mxu0 0.0
        %1432 = vmatprep.subr.mxu0 0.0
        %1433 = vmatpush1.msra.mxu0 0.0
        %1434 = vmatprep.subr.mxu0 0.0
        %1435 = vmatpush1.msra.mxu0 0.0
        %1436 = vmatprep.subr.mxu0 0.0
        %1437 = vmatpush1.msra.mxu0 0.0
        %1438 = vmatprep.subr.mxu0 0.0
        %1439 = vmatpush1.msra.mxu0 0.0
        %1440 = vmatprep.subr.mxu0 0.0
        %1441 = vmatpush1.msra.mxu0 0.0
        %1442 = vmatprep.subr.mxu0 0.0
        %1443 = vmatpush1.msra.mxu0 0.0
        %1444 = vmatprep.subr.mxu0 0.0
        %1445 = vmatpush1.msra.mxu0 0.0
        %1446 = vmatprep.subr.mxu0 0.0
        %1447 = vmatpush1.msra.mxu0 0.0
        %1448 = vmatprep.subr.mxu0 0.0
        %1449 = vmatpush1.msra.mxu0 0.0
        %1450 = vmatprep.subr.mxu0 0.0
        %1451 = vmatpush1.msra.mxu0 0.0
        %1452 = vmatprep.subr.mxu0 0.0
        %1453 = vmatpush1.msra.mxu0 0.0
        %1454 = vmatprep.subr.mxu0 0.0
        %1455 = vmatpush1.msra.mxu0 0.0
        %1456 = vmatprep.subr.mxu0 0.0
        %1457 = vmatpush1.msra.mxu0 0.0
        %1458 = vmatprep.subr.mxu0 0.0
        %1459 = vmatpush1.msra.mxu0 0.0
        %1460 = vmatprep.subr.mxu0 0.0
        %1461 = vmatpush1.msra.mxu0 0.0
        %1462 = vmatprep.subr.mxu0 0.0
        %1463 = vmatpush1.msra.mxu0 0.0
        %1464 = vmatprep.subr.mxu0 0.0
        %1465 = vmatpush1.msra.mxu0 0.0
        %1466 = vmatprep.subr.mxu0 0.0
        %1467 = vmatpush1.msra.mxu0 0.0
        %1468 = vmatprep.mubr.f32.mxu0 0.0
        %v1469 = vand.u32 %v1166, 4294901760
        %v1470 = vsub.f32 %v1166, %v1469
        %v1471 = vand.u32 %v1470, 4294901760
        %1472 = vmatmul.mubr.f32.gmra.mrb[0].mxu0 %v1471
        %v1473 = vpop.f32.mrb[0].mxu0
        %v1474 = vadd.f32 %v1399, %v1473
        %v1475 = vpop.f32.mrb[0].mxu0
        %1476 = vdwg.mxu0
        %1477 = vmatprep.subr.mxu0 0.0
        %v1478 = vand.u32 %v200, 4294901760
        %v1479 = vsub.f32 %v200, %v1478
        %v1480 = vand.u32 %v1479, 4294901760
        %1481 = vmatpush1.msra.mxu0 %v1480
        %1482 = vmatprep.subr.mxu0 0.0
        %v1483 = vand.u32 %v201, 4294901760
        %v1484 = vsub.f32 %v201, %v1483
        %v1485 = vand.u32 %v1484, 4294901760
        %1486 = vmatpush1.msra.mxu0 %v1485
        %1487 = vmatprep.subr.mxu0 0.0
        %1488 = vmatpush1.msra.mxu0 0.0
        %1489 = vmatprep.subr.mxu0 0.0
        %1490 = vmatpush1.msra.mxu0 0.0
        %1491 = vmatprep.subr.mxu0 0.0
        %1492 = vmatpush1.msra.mxu0 0.0
        %1493 = vmatprep.subr.mxu0 0.0
        %1494 = vmatpush1.msra.mxu0 0.0
        %1495 = vmatprep.subr.mxu0 0.0
        %1496 = vmatpush1.msra.mxu0 0.0
        %1497 = vmatprep.subr.mxu0 0.0
        %1498 = vmatpush1.msra.mxu0 0.0
        %1499 = vmatprep.subr.mxu0 0.0
        %1500 = vmatpush1.msra.mxu0 0.0
        %1501 = vmatprep.subr.mxu0 0.0
        %1502 = vmatpush1.msra.mxu0 0.0
        %1503 = vmatprep.subr.mxu0 0.0
        %1504 = vmatpush1.msra.mxu0 0.0
        %1505 = vmatprep.subr.mxu0 0.0
        %1506 = vmatpush1.msra.mxu0 0.0
        %1507 = vmatprep.subr.mxu0 0.0
        %1508 = vmatpush1.msra.mxu0 0.0
        %1509 = vmatprep.subr.mxu0 0.0
        %1510 = vmatpush1.msra.mxu0 0.0
        %1511 = vmatprep.subr.mxu0 0.0
        %1512 = vmatpush1.msra.mxu0 0.0
        %1513 = vmatprep.subr.mxu0 0.0
        %1514 = vmatpush1.msra.mxu0 0.0
        %1515 = vmatprep.subr.mxu0 0.0
        %1516 = vmatpush1.msra.mxu0 0.0
        %1517 = vmatprep.subr.mxu0 0.0
        %1518 = vmatpush1.msra.mxu0 0.0
        %1519 = vmatprep.subr.mxu0 0.0
        %1520 = vmatpush1.msra.mxu0 0.0
        %1521 = vmatprep.subr.mxu0 0.0
        %1522 = vmatpush1.msra.mxu0 0.0
        %1523 = vmatprep.subr.mxu0 0.0
        %1524 = vmatpush1.msra.mxu0 0.0
        %1525 = vmatprep.subr.mxu0 0.0
        %1526 = vmatpush1.msra.mxu0 0.0
        %1527 = vmatprep.subr.mxu0 0.0
        %1528 = vmatpush1.msra.mxu0 0.0
        %1529 = vmatprep.subr.mxu0 0.0
        %1530 = vmatpush1.msra.mxu0 0.0
        %1531 = vmatprep.subr.mxu0 0.0
        %1532 = vmatpush1.msra.mxu0 0.0
        %1533 = vmatprep.subr.mxu0 0.0
        %1534 = vmatpush1.msra.mxu0 0.0
        %1535 = vmatprep.subr.mxu0 0.0
        %1536 = vmatpush1.msra.mxu0 0.0
        %1537 = vmatprep.subr.mxu0 0.0
        %1538 = vmatpush1.msra.mxu0 0.0
        %1539 = vmatprep.subr.mxu0 0.0
        %1540 = vmatpush1.msra.mxu0 0.0
        %1541 = vmatprep.subr.mxu0 0.0
        %1542 = vmatpush1.msra.mxu0 0.0
        %1543 = vmatprep.subr.mxu0 0.0
        %1544 = vmatpush1.msra.mxu0 0.0
        %1545 = vmatprep.subr.mxu0 0.0
        %1546 = vmatpush1.msra.mxu0 0.0
        %1547 = vmatprep.mubr.f32.mxu0 0.0
        %v1548 = vand.u32 %v1166, 4294901760
        %1549 = vmatmul.mubr.f32.gmra.mrb[0].mxu0 %v1548
        %v1550 = vpop.f32.mrb[0].mxu0
        %v1551 = vadd.f32 %v1474, %v1550
        %v1552 = vpop.f32.mrb[0].mxu0
        %1553 = vdwg.mxu0
        %1554 = vmatprep.subr.mxu0 0.0
        %v1555 = vand.u32 %v200, 4294901760
        %1556 = vmatpush1.msra.mxu0 %v1555
        %1557 = vmatprep.subr.mxu0 0.0
        %v1558 = vand.u32 %v201, 4294901760
        %1559 = vmatpush1.msra.mxu0 %v1558
        %1560 = vmatprep.subr.mxu0 0.0
        %1561 = vmatpush1.msra.mxu0 0.0
        %1562 = vmatprep.subr.mxu0 0.0
        %1563 = vmatpush1.msra.mxu0 0.0
        %1564 = vmatprep.subr.mxu0 0.0
        %1565 = vmatpush1.msra.mxu0 0.0
        %1566 = vmatprep.subr.mxu0 0.0
        %1567 = vmatpush1.msra.mxu0 0.0
        %1568 = vmatprep.subr.mxu0 0.0
        %1569 = vmatpush1.msra.mxu0 0.0
        %1570 = vmatprep.subr.mxu0 0.0
        %1571 = vmatpush1.msra.mxu0 0.0
        %1572 = vmatprep.subr.mxu0 0.0
        %1573 = vmatpush1.msra.mxu0 0.0
        %1574 = vmatprep.subr.mxu0 0.0
        %1575 = vmatpush1.msra.mxu0 0.0
        %1576 = vmatprep.subr.mxu0 0.0
        %1577 = vmatpush1.msra.mxu0 0.0
        %1578 = vmatprep.subr.mxu0 0.0
        %1579 = vmatpush1.msra.mxu0 0.0
        %1580 = vmatprep.subr.mxu0 0.0
        %1581 = vmatpush1.msra.mxu0 0.0
        %1582 = vmatprep.subr.mxu0 0.0
        %1583 = vmatpush1.msra.mxu0 0.0
        %1584 = vmatprep.subr.mxu0 0.0
        %1585 = vmatpush1.msra.mxu0 0.0
        %1586 = vmatprep.subr.mxu0 0.0
        %1587 = vmatpush1.msra.mxu0 0.0
        %1588 = vmatprep.subr.mxu0 0.0
        %1589 = vmatpush1.msra.mxu0 0.0
        %1590 = vmatprep.subr.mxu0 0.0
        %1591 = vmatpush1.msra.mxu0 0.0
        %1592 = vmatprep.subr.mxu0 0.0
        %1593 = vmatpush1.msra.mxu0 0.0
        %1594 = vmatprep.subr.mxu0 0.0
        %1595 = vmatpush1.msra.mxu0 0.0
        %1596 = vmatprep.subr.mxu0 0.0
        %1597 = vmatpush1.msra.mxu0 0.0
        %1598 = vmatprep.subr.mxu0 0.0
        %1599 = vmatpush1.msra.mxu0 0.0
        %1600 = vmatprep.subr.mxu0 0.0
        %1601 = vmatpush1.msra.mxu0 0.0
        %1602 = vmatprep.subr.mxu0 0.0
        %1603 = vmatpush1.msra.mxu0 0.0
        %1604 = vmatprep.subr.mxu0 0.0
        %1605 = vmatpush1.msra.mxu0 0.0
        %1606 = vmatprep.subr.mxu0 0.0
        %1607 = vmatpush1.msra.mxu0 0.0
        %1608 = vmatprep.subr.mxu0 0.0
        %1609 = vmatpush1.msra.mxu0 0.0
        %1610 = vmatprep.subr.mxu0 0.0
        %1611 = vmatpush1.msra.mxu0 0.0
        %1612 = vmatprep.subr.mxu0 0.0
        %1613 = vmatpush1.msra.mxu0 0.0
        %1614 = vmatprep.subr.mxu0 0.0
        %1615 = vmatpush1.msra.mxu0 0.0
        %1616 = vmatprep.subr.mxu0 0.0
        %1617 = vmatpush1.msra.mxu0 0.0
        %1618 = vmatprep.subr.mxu0 0.0
        %1619 = vmatpush1.msra.mxu0 0.0
        %1620 = vmatprep.mubr.f32.mxu0 0.0
        %v1621 = vand.u32 %v1166, 4294901760
        %1622 = vmatmul.mubr.f32.gmra.mrb[0].mxu0 %v1621
        %v1623 = vpop.f32.mrb[0].mxu0
        %v1624 = vadd.f32 %v1551, %v1623
        %v1625 = vpop.f32.mrb[0].mxu0
        %1626 = vdwg.mxu0
        %s1627 = scalar_lea.vmem %s198, 32
        %1628 = vst.msk [vmem:[%s1627] sm:$0xf] %vm665, %v1624
        %1630 = vrot.lane.b32.xlu0 %v1624, 124
        %v1631 = vpop.permute.xlu0 %1630
        %s1633 = scalar_lea.vmem %s198, 36
        %1634 = vst.msk [vmem:[%s1633] sm:$0xf] %vm665, %v1631
        %1635 = vrot.lane.b32.xlu0 %v1624, 120
        %v1636 = vpop.permute.xlu0 %1635
        %s1638 = scalar_lea.vmem %s198, 40
        %1639 = vst.msk [vmem:[%s1638] sm:$0xf] %vm665, %v1636
        %1640 = vrot.lane.b32.xlu0 %v1624, 116
        %v1641 = vpop.permute.xlu0 %1640
        %s1643 = scalar_lea.vmem %s198, 44
        %1644 = vst.msk [vmem:[%s1643] sm:$0xf] %vm665, %v1641
        %1645 = vrot.lane.b32.xlu0 %v199, 80
        %v1646 = vpop.permute.xlu0 %1645
        %v1647 = vsel %vm202, %v1646, 0
        %1649 = vmatprep.subr.mxu0 0.0
        %v1650 = vand.u32 %v200, 4294901760
        %1651 = vmatpush1.msra.mxu0 %v1650
        %1652 = vmatprep.subr.mxu0 0.0
        %v1653 = vand.u32 %v201, 4294901760
        %1654 = vmatpush1.msra.mxu0 %v1653
        %1655 = vmatprep.subr.mxu0 0.0
        %1656 = vmatpush1.msra.mxu0 0.0
        %1657 = vmatprep.subr.mxu0 0.0
        %1658 = vmatpush1.msra.mxu0 0.0
        %1659 = vmatprep.subr.mxu0 0.0
        %1660 = vmatpush1.msra.mxu0 0.0
        %1661 = vmatprep.subr.mxu0 0.0
        %1662 = vmatpush1.msra.mxu0 0.0
        %1663 = vmatprep.subr.mxu0 0.0
        %1664 = vmatpush1.msra.mxu0 0.0
        %1665 = vmatprep.subr.mxu0 0.0
        %1666 = vmatpush1.msra.mxu0 0.0
        %1667 = vmatprep.subr.mxu0 0.0
        %1668 = vmatpush1.msra.mxu0 0.0
        %1669 = vmatprep.subr.mxu0 0.0
        %1670 = vmatpush1.msra.mxu0 0.0
        %1671 = vmatprep.subr.mxu0 0.0
        %1672 = vmatpush1.msra.mxu0 0.0
        %1673 = vmatprep.subr.mxu0 0.0
        %1674 = vmatpush1.msra.mxu0 0.0
        %1675 = vmatprep.subr.mxu0 0.0
        %1676 = vmatpush1.msra.mxu0 0.0
        %1677 = vmatprep.subr.mxu0 0.0
        %1678 = vmatpush1.msra.mxu0 0.0
        %1679 = vmatprep.subr.mxu0 0.0
        %1680 = vmatpush1.msra.mxu0 0.0
        %1681 = vmatprep.subr.mxu0 0.0
        %1682 = vmatpush1.msra.mxu0 0.0
        %1683 = vmatprep.subr.mxu0 0.0
        %1684 = vmatpush1.msra.mxu0 0.0
        %1685 = vmatprep.subr.mxu0 0.0
        %1686 = vmatpush1.msra.mxu0 0.0
        %1687 = vmatprep.subr.mxu0 0.0
        %1688 = vmatpush1.msra.mxu0 0.0
        %1689 = vmatprep.subr.mxu0 0.0
        %1690 = vmatpush1.msra.mxu0 0.0
        %1691 = vmatprep.subr.mxu0 0.0
        %1692 = vmatpush1.msra.mxu0 0.0
        %1693 = vmatprep.subr.mxu0 0.0
        %1694 = vmatpush1.msra.mxu0 0.0
        %1695 = vmatprep.subr.mxu0 0.0
        %1696 = vmatpush1.msra.mxu0 0.0
        %1697 = vmatprep.subr.mxu0 0.0
        %1698 = vmatpush1.msra.mxu0 0.0
        %1699 = vmatprep.subr.mxu0 0.0
        %1700 = vmatpush1.msra.mxu0 0.0
        %1701 = vmatprep.subr.mxu0 0.0
        %1702 = vmatpush1.msra.mxu0 0.0
        %1703 = vmatprep.subr.mxu0 0.0
        %1704 = vmatpush1.msra.mxu0 0.0
        %1705 = vmatprep.subr.mxu0 0.0
        %1706 = vmatpush1.msra.mxu0 0.0
        %1707 = vmatprep.subr.mxu0 0.0
        %1708 = vmatpush1.msra.mxu0 0.0
        %1709 = vmatprep.subr.mxu0 0.0
        %1710 = vmatpush1.msra.mxu0 0.0
        %1711 = vmatprep.subr.mxu0 0.0
        %1712 = vmatpush1.msra.mxu0 0.0
        %1713 = vmatprep.subr.mxu0 0.0
        %1714 = vmatpush1.msra.mxu0 0.0
        %1715 = vmatprep.mubr.f32.mxu0 0.0
        %v1716 = vand.u32 %v1647, 4294901760
        %v1717 = vsub.f32 %v1647, %v1716
        %v1718 = vand.u32 %v1717, 4294901760
        %v1719 = vsub.f32 %v1717, %v1718
        %v1720 = vand.u32 %v1719, 4294901760
        %1721 = vmatmul.mubr.f32.gmra.mrb[0].mxu0 %v1720
        %v1722 = vpop.f32.mrb[0].mxu0
        %v1723 = vadd.f32 0.0, %v1722
        %v1724 = vpop.f32.mrb[0].mxu0
        %1725 = vdwg.mxu0
        %1726 = vmatprep.subr.mxu0 0.0
        %v1727 = vand.u32 %v200, 4294901760
        %v1728 = vsub.f32 %v200, %v1727
        %v1729 = vand.u32 %v1728, 4294901760
        %v1730 = vsub.f32 %v1728, %v1729
        %v1731 = vand.u32 %v1730, 4294901760
        %1732 = vmatpush1.msra.mxu0 %v1731
        %1733 = vmatprep.subr.mxu0 0.0
        %v1734 = vand.u32 %v201, 4294901760
        %v1735 = vsub.f32 %v201, %v1734
        %v1736 = vand.u32 %v1735, 4294901760
        %v1737 = vsub.f32 %v1735, %v1736
        %v1738 = vand.u32 %v1737, 4294901760
        %1739 = vmatpush1.msra.mxu0 %v1738
        %1740 = vmatprep.subr.mxu0 0.0
        %1741 = vmatpush1.msra.mxu0 0.0
        %1742 = vmatprep.subr.mxu0 0.0
        %1743 = vmatpush1.msra.mxu0 0.0
        %1744 = vmatprep.subr.mxu0 0.0
        %1745 = vmatpush1.msra.mxu0 0.0
        %1746 = vmatprep.subr.mxu0 0.0
        %1747 = vmatpush1.msra.mxu0 0.0
        %1748 = vmatprep.subr.mxu0 0.0
        %1749 = vmatpush1.msra.mxu0 0.0
        %1750 = vmatprep.subr.mxu0 0.0
        %1751 = vmatpush1.msra.mxu0 0.0
        %1752 = vmatprep.subr.mxu0 0.0
        %1753 = vmatpush1.msra.mxu0 0.0
        %1754 = vmatprep.subr.mxu0 0.0
        %1755 = vmatpush1.msra.mxu0 0.0
        %1756 = vmatprep.subr.mxu0 0.0
        %1757 = vmatpush1.msra.mxu0 0.0
        %1758 = vmatprep.subr.mxu0 0.0
        %1759 = vmatpush1.msra.mxu0 0.0
        %1760 = vmatprep.subr.mxu0 0.0
        %1761 = vmatpush1.msra.mxu0 0.0
        %1762 = vmatprep.subr.mxu0 0.0
        %1763 = vmatpush1.msra.mxu0 0.0
        %1764 = vmatprep.subr.mxu0 0.0
        %1765 = vmatpush1.msra.mxu0 0.0
        %1766 = vmatprep.subr.mxu0 0.0
        %1767 = vmatpush1.msra.mxu0 0.0
        %1768 = vmatprep.subr.mxu0 0.0
        %1769 = vmatpush1.msra.mxu0 0.0
        %1770 = vmatprep.subr.mxu0 0.0
        %1771 = vmatpush1.msra.mxu0 0.0
        %1772 = vmatprep.subr.mxu0 0.0
        %1773 = vmatpush1.msra.mxu0 0.0
        %1774 = vmatprep.subr.mxu0 0.0
        %1775 = vmatpush1.msra.mxu0 0.0
        %1776 = vmatprep.subr.mxu0 0.0
        %1777 = vmatpush1.msra.mxu0 0.0
        %1778 = vmatprep.subr.mxu0 0.0
        %1779 = vmatpush1.msra.mxu0 0.0
        %1780 = vmatprep.subr.mxu0 0.0
        %1781 = vmatpush1.msra.mxu0 0.0
        %1782 = vmatprep.subr.mxu0 0.0
        %1783 = vmatpush1.msra.mxu0 0.0
        %1784 = vmatprep.subr.mxu0 0.0
        %1785 = vmatpush1.msra.mxu0 0.0
        %1786 = vmatprep.subr.mxu0 0.0
        %1787 = vmatpush1.msra.mxu0 0.0
        %1788 = vmatprep.subr.mxu0 0.0
        %1789 = vmatpush1.msra.mxu0 0.0
        %1790 = vmatprep.subr.mxu0 0.0
        %1791 = vmatpush1.msra.mxu0 0.0
        %1792 = vmatprep.subr.mxu0 0.0
        %1793 = vmatpush1.msra.mxu0 0.0
        %1794 = vmatprep.subr.mxu0 0.0
        %1795 = vmatpush1.msra.mxu0 0.0
        %1796 = vmatprep.subr.mxu0 0.0
        %1797 = vmatpush1.msra.mxu0 0.0
        %1798 = vmatprep.subr.mxu0 0.0
        %1799 = vmatpush1.msra.mxu0 0.0
        %1800 = vmatprep.mubr.f32.mxu0 0.0
        %v1801 = vand.u32 %v1647, 4294901760
        %1802 = vmatmul.mubr.f32.gmra.mrb[0].mxu0 %v1801
        %v1803 = vpop.f32.mrb[0].mxu0
        %v1804 = vadd.f32 %v1723, %v1803
        %v1805 = vpop.f32.mrb[0].mxu0
        %1806 = vdwg.mxu0
        %1807 = vmatprep.subr.mxu0 0.0
        %v1808 = vand.u32 %v200, 4294901760
        %v1809 = vsub.f32 %v200, %v1808
        %1810 = vmatpush1.msra.mxu0 %v1809
        %1811 = vmatprep.subr.mxu0 0.0
        %v1812 = vand.u32 %v201, 4294901760
        %v1813 = vsub.f32 %v201, %v1812
        %1814 = vmatpush1.msra.mxu0 %v1813
        %1815 = vmatprep.subr.mxu0 0.0
        %1816 = vmatpush1.msra.mxu0 0.0
        %1817 = vmatprep.subr.mxu0 0.0
        %1818 = vmatpush1.msra.mxu0 0.0
        %1819 = vmatprep.subr.mxu0 0.0
        %1820 = vmatpush1.msra.mxu0 0.0
        %1821 = vmatprep.subr.mxu0 0.0
        %1822 = vmatpush1.msra.mxu0 0.0
        %1823 = vmatprep.subr.mxu0 0.0
        %1824 = vmatpush1.msra.mxu0 0.0
        %1825 = vmatprep.subr.mxu0 0.0
        %1826 = vmatpush1.msra.mxu0 0.0
        %1827 = vmatprep.subr.mxu0 0.0
        %1828 = vmatpush1.msra.mxu0 0.0
        %1829 = vmatprep.subr.mxu0 0.0
        %1830 = vmatpush1.msra.mxu0 0.0
        %1831 = vmatprep.subr.mxu0 0.0
        %1832 = vmatpush1.msra.mxu0 0.0
        %1833 = vmatprep.subr.mxu0 0.0
        %1834 = vmatpush1.msra.mxu0 0.0
        %1835 = vmatprep.subr.mxu0 0.0
        %1836 = vmatpush1.msra.mxu0 0.0
        %1837 = vmatprep.subr.mxu0 0.0
        %1838 = vmatpush1.msra.mxu0 0.0
        %1839 = vmatprep.subr.mxu0 0.0
        %1840 = vmatpush1.msra.mxu0 0.0
        %1841 = vmatprep.subr.mxu0 0.0
        %1842 = vmatpush1.msra.mxu0 0.0
        %1843 = vmatprep.subr.mxu0 0.0
        %1844 = vmatpush1.msra.mxu0 0.0
        %1845 = vmatprep.subr.mxu0 0.0
        %1846 = vmatpush1.msra.mxu0 0.0
        %1847 = vmatprep.subr.mxu0 0.0
        %1848 = vmatpush1.msra.mxu0 0.0
        %1849 = vmatprep.subr.mxu0 0.0
        %1850 = vmatpush1.msra.mxu0 0.0
        %1851 = vmatprep.subr.mxu0 0.0
        %1852 = vmatpush1.msra.mxu0 0.0
        %1853 = vmatprep.subr.mxu0 0.0
        %1854 = vmatpush1.msra.mxu0 0.0
        %1855 = vmatprep.subr.mxu0 0.0
        %1856 = vmatpush1.msra.mxu0 0.0
        %1857 = vmatprep.subr.mxu0 0.0
        %1858 = vmatpush1.msra.mxu0 0.0
        %1859 = vmatprep.subr.mxu0 0.0
        %1860 = vmatpush1.msra.mxu0 0.0
        %1861 = vmatprep.subr.mxu0 0.0
        %1862 = vmatpush1.msra.mxu0 0.0
        %1863 = vmatprep.subr.mxu0 0.0
        %1864 = vmatpush1.msra.mxu0 0.0
        %1865 = vmatprep.subr.mxu0 0.0
        %1866 = vmatpush1.msra.mxu0 0.0
        %1867 = vmatprep.subr.mxu0 0.0
        %1868 = vmatpush1.msra.mxu0 0.0
        %1869 = vmatprep.subr.mxu0 0.0
        %1870 = vmatpush1.msra.mxu0 0.0
        %1871 = vmatprep.subr.mxu0 0.0
        %1872 = vmatpush1.msra.mxu0 0.0
        %1873 = vmatprep.subr.mxu0 0.0
        %1874 = vmatpush1.msra.mxu0 0.0
        %1875 = vmatprep.mubr.f32.mxu0 0.0
        %v1876 = vand.u32 %v1647, 4294901760
        %v1877 = vsub.f32 %v1647, %v1876
        %1878 = vmatmul.mubr.f32.gmra.mrb[0].mxu0 %v1877
        %v1879 = vpop.f32.mrb[0].mxu0
        %v1880 = vadd.f32 %v1804, %v1879
        %v1881 = vpop.f32.mrb[0].mxu0
        %1882 = vdwg.mxu0
        %1883 = vmatprep.subr.mxu0 0.0
        %v1884 = vand.u32 %v200, 4294901760
        %1885 = vmatpush1.msra.mxu0 %v1884
        %1886 = vmatprep.subr.mxu0 0.0
        %v1887 = vand.u32 %v201, 4294901760
        %1888 = vmatpush1.msra.mxu0 %v1887
        %1889 = vmatprep.subr.mxu0 0.0
        %1890 = vmatpush1.msra.mxu0 0.0
        %1891 = vmatprep.subr.mxu0 0.0
        %1892 = vmatpush1.msra.mxu0 0.0
        %1893 = vmatprep.subr.mxu0 0.0
        %1894 = vmatpush1.msra.mxu0 0.0
        %1895 = vmatprep.subr.mxu0 0.0
        %1896 = vmatpush1.msra.mxu0 0.0
        %1897 = vmatprep.subr.mxu0 0.0
        %1898 = vmatpush1.msra.mxu0 0.0
        %1899 = vmatprep.subr.mxu0 0.0
        %1900 = vmatpush1.msra.mxu0 0.0
        %1901 = vmatprep.subr.mxu0 0.0
        %1902 = vmatpush1.msra.mxu0 0.0
        %1903 = vmatprep.subr.mxu0 0.0
        %1904 = vmatpush1.msra.mxu0 0.0
        %1905 = vmatprep.subr.mxu0 0.0
        %1906 = vmatpush1.msra.mxu0 0.0
        %1907 = vmatprep.subr.mxu0 0.0
        %1908 = vmatpush1.msra.mxu0 0.0
        %1909 = vmatprep.subr.mxu0 0.0
        %1910 = vmatpush1.msra.mxu0 0.0
        %1911 = vmatprep.subr.mxu0 0.0
        %1912 = vmatpush1.msra.mxu0 0.0
        %1913 = vmatprep.subr.mxu0 0.0
        %1914 = vmatpush1.msra.mxu0 0.0
        %1915 = vmatprep.subr.mxu0 0.0
        %1916 = vmatpush1.msra.mxu0 0.0
        %1917 = vmatprep.subr.mxu0 0.0
        %1918 = vmatpush1.msra.mxu0 0.0
        %1919 = vmatprep.subr.mxu0 0.0
        %1920 = vmatpush1.msra.mxu0 0.0
        %1921 = vmatprep.subr.mxu0 0.0
        %1922 = vmatpush1.msra.mxu0 0.0
        %1923 = vmatprep.subr.mxu0 0.0
        %1924 = vmatpush1.msra.mxu0 0.0
        %1925 = vmatprep.subr.mxu0 0.0
        %1926 = vmatpush1.msra.mxu0 0.0
        %1927 = vmatprep.subr.mxu0 0.0
        %1928 = vmatpush1.msra.mxu0 0.0
        %1929 = vmatprep.subr.mxu0 0.0
        %1930 = vmatpush1.msra.mxu0 0.0
        %1931 = vmatprep.subr.mxu0 0.0
        %1932 = vmatpush1.msra.mxu0 0.0
        %1933 = vmatprep.subr.mxu0 0.0
        %1934 = vmatpush1.msra.mxu0 0.0
        %1935 = vmatprep.subr.mxu0 0.0
        %1936 = vmatpush1.msra.mxu0 0.0
        %1937 = vmatprep.subr.mxu0 0.0
        %1938 = vmatpush1.msra.mxu0 0.0
        %1939 = vmatprep.subr.mxu0 0.0
        %1940 = vmatpush1.msra.mxu0 0.0
        %1941 = vmatprep.subr.mxu0 0.0
        %1942 = vmatpush1.msra.mxu0 0.0
        %1943 = vmatprep.subr.mxu0 0.0
        %1944 = vmatpush1.msra.mxu0 0.0
        %1945 = vmatprep.subr.mxu0 0.0
        %1946 = vmatpush1.msra.mxu0 0.0
        %1947 = vmatprep.subr.mxu0 0.0
        %1948 = vmatpush1.msra.mxu0 0.0
        %1949 = vmatprep.mubr.f32.mxu0 0.0
        %v1950 = vand.u32 %v1647, 4294901760
        %v1951 = vsub.f32 %v1647, %v1950
        %v1952 = vand.u32 %v1951, 4294901760
        %1953 = vmatmul.mubr.f32.gmra.mrb[0].mxu0 %v1952
        %v1954 = vpop.f32.mrb[0].mxu0
        %v1955 = vadd.f32 %v1880, %v1954
        %v1956 = vpop.f32.mrb[0].mxu0
        %1957 = vdwg.mxu0
        %1958 = vmatprep.subr.mxu0 0.0
        %v1959 = vand.u32 %v200, 4294901760
        %v1960 = vsub.f32 %v200, %v1959
        %v1961 = vand.u32 %v1960, 4294901760
        %1962 = vmatpush1.msra.mxu0 %v1961
        %1963 = vmatprep.subr.mxu0 0.0
        %v1964 = vand.u32 %v201, 4294901760
        %v1965 = vsub.f32 %v201, %v1964
        %v1966 = vand.u32 %v1965, 4294901760
        %1967 = vmatpush1.msra.mxu0 %v1966
        %1968 = vmatprep.subr.mxu0 0.0
        %1969 = vmatpush1.msra.mxu0 0.0
        %1970 = vmatprep.subr.mxu0 0.0
        %1971 = vmatpush1.msra.mxu0 0.0
        %1972 = vmatprep.subr.mxu0 0.0
        %1973 = vmatpush1.msra.mxu0 0.0
        %1974 = vmatprep.subr.mxu0 0.0
        %1975 = vmatpush1.msra.mxu0 0.0
        %1976 = vmatprep.subr.mxu0 0.0
        %1977 = vmatpush1.msra.mxu0 0.0
        %1978 = vmatprep.subr.mxu0 0.0
        %1979 = vmatpush1.msra.mxu0 0.0
        %1980 = vmatprep.subr.mxu0 0.0
        %1981 = vmatpush1.msra.mxu0 0.0
        %1982 = vmatprep.subr.mxu0 0.0
        %1983 = vmatpush1.msra.mxu0 0.0
        %1984 = vmatprep.subr.mxu0 0.0
        %1985 = vmatpush1.msra.mxu0 0.0
        %1986 = vmatprep.subr.mxu0 0.0
        %1987 = vmatpush1.msra.mxu0 0.0
        %1988 = vmatprep.subr.mxu0 0.0
        %1989 = vmatpush1.msra.mxu0 0.0
        %1990 = vmatprep.subr.mxu0 0.0
        %1991 = vmatpush1.msra.mxu0 0.0
        %1992 = vmatprep.subr.mxu0 0.0
        %1993 = vmatpush1.msra.mxu0 0.0
        %1994 = vmatprep.subr.mxu0 0.0
        %1995 = vmatpush1.msra.mxu0 0.0
        %1996 = vmatprep.subr.mxu0 0.0
        %1997 = vmatpush1.msra.mxu0 0.0
        %1998 = vmatprep.subr.mxu0 0.0
        %1999 = vmatpush1.msra.mxu0 0.0
        %2000 = vmatprep.subr.mxu0 0.0
        %2001 = vmatpush1.msra.mxu0 0.0
        %2002 = vmatprep.subr.mxu0 0.0
        %2003 = vmatpush1.msra.mxu0 0.0
        %2004 = vmatprep.subr.mxu0 0.0
        %2005 = vmatpush1.msra.mxu0 0.0
        %2006 = vmatprep.subr.mxu0 0.0
        %2007 = vmatpush1.msra.mxu0 0.0
        %2008 = vmatprep.subr.mxu0 0.0
        %2009 = vmatpush1.msra.mxu0 0.0
        %2010 = vmatprep.subr.mxu0 0.0
        %2011 = vmatpush1.msra.mxu0 0.0
        %2012 = vmatprep.subr.mxu0 0.0
        %2013 = vmatpush1.msra.mxu0 0.0
        %2014 = vmatprep.subr.mxu0 0.0
        %2015 = vmatpush1.msra.mxu0 0.0
        %2016 = vmatprep.subr.mxu0 0.0
        %2017 = vmatpush1.msra.mxu0 0.0
        %2018 = vmatprep.subr.mxu0 0.0
        %2019 = vmatpush1.msra.mxu0 0.0
        %2020 = vmatprep.subr.mxu0 0.0
        %2021 = vmatpush1.msra.mxu0 0.0
        %2022 = vmatprep.subr.mxu0 0.0
        %2023 = vmatpush1.msra.mxu0 0.0
        %2024 = vmatprep.subr.mxu0 0.0
        %2025 = vmatpush1.msra.mxu0 0.0
        %2026 = vmatprep.subr.mxu0 0.0
        %2027 = vmatpush1.msra.mxu0 0.0
        %2028 = vmatprep.mubr.f32.mxu0 0.0
        %v2029 = vand.u32 %v1647, 4294901760
        %2030 = vmatmul.mubr.f32.gmra.mrb[0].mxu0 %v2029
        %v2031 = vpop.f32.mrb[0].mxu0
        %v2032 = vadd.f32 %v1955, %v2031
        %v2033 = vpop.f32.mrb[0].mxu0
        %2034 = vdwg.mxu0
        %2035 = vmatprep.subr.mxu0 0.0
        %v2036 = vand.u32 %v200, 4294901760
        %2037 = vmatpush1.msra.mxu0 %v2036
        %2038 = vmatprep.subr.mxu0 0.0
        %v2039 = vand.u32 %v201, 4294901760
        %2040 = vmatpush1.msra.mxu0 %v2039
        %2041 = vmatprep.subr.mxu0 0.0
        %2042 = vmatpush1.msra.mxu0 0.0
        %2043 = vmatprep.subr.mxu0 0.0
        %2044 = vmatpush1.msra.mxu0 0.0
        %2045 = vmatprep.subr.mxu0 0.0
        %2046 = vmatpush1.msra.mxu0 0.0
        %2047 = vmatprep.subr.mxu0 0.0
        %2048 = vmatpush1.msra.mxu0 0.0
        %2049 = vmatprep.subr.mxu0 0.0
        %2050 = vmatpush1.msra.mxu0 0.0
        %2051 = vmatprep.subr.mxu0 0.0
        %2052 = vmatpush1.msra.mxu0 0.0
        %2053 = vmatprep.subr.mxu0 0.0
        %2054 = vmatpush1.msra.mxu0 0.0
        %2055 = vmatprep.subr.mxu0 0.0
        %2056 = vmatpush1.msra.mxu0 0.0
        %2057 = vmatprep.subr.mxu0 0.0
        %2058 = vmatpush1.msra.mxu0 0.0
        %2059 = vmatprep.subr.mxu0 0.0
        %2060 = vmatpush1.msra.mxu0 0.0
        %2061 = vmatprep.subr.mxu0 0.0
        %2062 = vmatpush1.msra.mxu0 0.0
        %2063 = vmatprep.subr.mxu0 0.0
        %2064 = vmatpush1.msra.mxu0 0.0
        %2065 = vmatprep.subr.mxu0 0.0
        %2066 = vmatpush1.msra.mxu0 0.0
        %2067 = vmatprep.subr.mxu0 0.0
        %2068 = vmatpush1.msra.mxu0 0.0
        %2069 = vmatprep.subr.mxu0 0.0
        %2070 = vmatpush1.msra.mxu0 0.0
        %2071 = vmatprep.subr.mxu0 0.0
        %2072 = vmatpush1.msra.mxu0 0.0
        %2073 = vmatprep.subr.mxu0 0.0
        %2074 = vmatpush1.msra.mxu0 0.0
        %2075 = vmatprep.subr.mxu0 0.0
        %2076 = vmatpush1.msra.mxu0 0.0
        %2077 = vmatprep.subr.mxu0 0.0
        %2078 = vmatpush1.msra.mxu0 0.0
        %2079 = vmatprep.subr.mxu0 0.0
        %2080 = vmatpush1.msra.mxu0 0.0
        %2081 = vmatprep.subr.mxu0 0.0
        %2082 = vmatpush1.msra.mxu0 0.0
        %2083 = vmatprep.subr.mxu0 0.0
        %2084 = vmatpush1.msra.mxu0 0.0
        %2085 = vmatprep.subr.mxu0 0.0
        %2086 = vmatpush1.msra.mxu0 0.0
        %2087 = vmatprep.subr.mxu0 0.0
        %2088 = vmatpush1.msra.mxu0 0.0
        %2089 = vmatprep.subr.mxu0 0.0
        %2090 = vmatpush1.msra.mxu0 0.0
        %2091 = vmatprep.subr.mxu0 0.0
        %2092 = vmatpush1.msra.mxu0 0.0
        %2093 = vmatprep.subr.mxu0 0.0
        %2094 = vmatpush1.msra.mxu0 0.0
        %2095 = vmatprep.subr.mxu0 0.0
        %2096 = vmatpush1.msra.mxu0 0.0
        %2097 = vmatprep.subr.mxu0 0.0
        %2098 = vmatpush1.msra.mxu0 0.0
        %2099 = vmatprep.subr.mxu0 0.0
        %2100 = vmatpush1.msra.mxu0 0.0
        %2101 = vmatprep.mubr.f32.mxu0 0.0
        %v2102 = vand.u32 %v1647, 4294901760
        %2103 = vmatmul.mubr.f32.gmra.mrb[0].mxu0 %v2102
        %v2104 = vpop.f32.mrb[0].mxu0
        %v2105 = vadd.f32 %v2032, %v2104
        %v2106 = vpop.f32.mrb[0].mxu0
        %2107 = vdwg.mxu0
        %s2108 = scalar_lea.vmem %s198, 48
        %2109 = vst.msk [vmem:[%s2108] sm:$0xf] %vm665, %v2105
        %2111 = vrot.lane.b32.xlu0 %v2105, 124
        %v2112 = vpop.permute.xlu0 %2111
        %s2114 = scalar_lea.vmem %s198, 52
        %2115 = vst.msk [vmem:[%s2114] sm:$0xf] %vm665, %v2112
        %2116 = vrot.lane.b32.xlu0 %v2105, 120
        %v2117 = vpop.permute.xlu0 %2116
        %s2119 = scalar_lea.vmem %s198, 56
        %2120 = vst.msk [vmem:[%s2119] sm:$0xf] %vm665, %v2117
        %2121 = vrot.lane.b32.xlu0 %v2105, 116
        %v2122 = vpop.permute.xlu0 %2121
        %s2124 = scalar_lea.vmem %s198, 60
        %2125 = vst.msk [vmem:[%s2124] sm:$0xf] %vm665, %v2122
        %p2126 = scmp.lt.s32.totalorder %s21, 1
        %s2127 = scalar_select %p2126, %s21, 1
        %p2128 = scmp.lt.s32.totalorder %s22, 0
        %s2129 = scalar_select %p2128, %s22, 0
        %s2130 = smul.addr %s2127, 16
        %s2131 = sadd.s32 %s2129, %s2130
        %s2132 = smul.addr %s2131, 4
        %s2133 = scalar_lea.vmem %s2, %s2132
        // Predicated region
        $region37: #{tpu_custom_call.1} parent=27 // pred_check
          %p2134 = pneg %p98
        $region38: #{tpu_custom_call.1} parent=27 // pred_check_branch
          %2136 = sbr.rel (%p2134) target = $region40
        $region39: #{tpu_custom_call.1} parent=27 // pred_region
          _
        $region40: #{tpu_custom_call.1} parent=27 // pred_fallthru
          _
      $region28: #{tpu_custom_call.1} parent=5 // pred_fallthru
        _
      %p2137 = scmp.le.s32.totalorder 2, %s12
      // Predicated region
      $region41: #{tpu_custom_call.1} parent=5 // pred_check
        %p2138 = pneg %p2137
      $region42: #{tpu_custom_call.1} parent=5 // pred_check_branch
        %2140 = sbr.rel (%p2138) target = $region44
      $region43: #{tpu_custom_call.1} parent=5 // pred_region
        %s2141 = ssub.s32 %s12, 2
        // Predicated region
        $region45: #{tpu_custom_call.1} parent=43 // pred_check
          %p2142 = pneg %p104
        $region46: #{tpu_custom_call.1} parent=43 // pred_check_branch
          %2144 = sbr.rel (%p2142) target = $region48
        $region47: #{tpu_custom_call.1} parent=43 // pred_region
          %p2145 = scmp.lt.s32.totalorder %s23, 1
          %s2146 = scalar_select %p2145, %s23, 1
          %p2147 = scmp.lt.s32.totalorder %s24, 0
          %s2148 = scalar_select %p2147, %s24, 0
          %s2149 = smul.addr %s2146, 16
          %s2150 = sadd.s32 %s2148, %s2149
          %s2151 = smul.addr %s2150, 4
          %s2152 = scalar_lea.vmem %s2, %s2151
        $region48: #{tpu_custom_call.1} parent=43 // pred_fallthru
          _
      $region44: #{tpu_custom_call.1} parent=5 // pred_fallthru
        _
    $region6: #{tpu_custom_call.1} parent=1 // loop_footer
      %s16 = sadd.s32 1, %s12
    $region7: #{tpu_custom_call.1} parent=1 // loop_footer_branch
      %11 = sbr.rel target = $region3
    $region8: #{tpu_custom_call.1} parent=1 // loop_exit
      _
    %2153 = vsyncpa [#allocation3], 1
    %s2154 = scalar_lea.sflag [#allocation3], 1
    %2155 = vsyncpa %s2154, 1
    %2156 = vsyncpa [#allocation5], 1

</llo_original>
